<compile_context>
chip_gen: v5e
topology: v5e:2x2
jax: 0.10.0
libtpu: 0.0.40
codegen_flags: <defaults>
</compile_context>

<pallas_src>
import functools
import math

import jax
import jax.numpy as jnp
from jax import lax
from jax.experimental import pallas as pl
from jax.experimental.pallas import tpu as pltpu

_CA_TILES = (2048, 1024, 512, 256, 128)
_TQ_TILES = (512, 256, 128)
_TK_TILES = (2048, 1024, 512, 256, 128)
_FUSED_BUDGET_BYTES = 20 * 1024 * 1024   # per-batch VMEM budget for fused path


# ------------------------------ helpers ------------------------------------ #

def _vmem_limit_bytes():
    cap = 128 * 1024 * 1024
    try:
        cap = int(getattr(pltpu.get_tpu_info(), "vmem_capacity_bytes", cap))
    except Exception:
        pass
    # ~3/4 of physical VMEM: ~96 MiB on v5e/v6e, ~48 MiB on v7x.
    return int(min(96 * 1024 * 1024, max(32 * 1024 * 1024, (cap * 3) // 4)))


def _compiler_params(dims):
    return pltpu.CompilerParams(dimension_semantics=dims,
                                vmem_limit_bytes=_vmem_limit_bytes())


def _pick_tile(S, preferred):
    for t in preferred:
        if S % t == 0 and S // t >= 2:
            return t
    for t in preferred:
        if S % t == 0:
            return t
    return S          # fallback: single full block (no pipelining)


def _pick_tile_any(S, preferred):
    for t in preferred:
        if S % t == 0:
            return t
    return S


def _fused_fits(S, C, C8p):
    f32 = 4
    est = (5 * S * C * f32          # x, cab, v, out, temporaries
           + 2 * S * S * f32        # SA logits + probs
           + 3 * S * C8p * f32      # q, k (+ slack)
           + 2 * C * C * f32        # energy + channel attention
           + (2 * C * C8p + 2 * C * C) * 2)
    return 2 * est <= _FUSED_BUDGET_BYTES


# ------------------------- fused small-problem kernel ----------------------- #

def _fused_kernel(gamma_ca_ref, gamma_sa_ref, x_ref,
                  wq_ref, bq_ref, wk_ref, bk_ref, wv_ref, bv_ref, o_ref):
    """Whole Positioning.forward for one batch element, resident in VMEM."""
    x = x_ref[0]                                              # (S, C) f32
    xb = x.astype(jnp.bfloat16)

    # --- CA_Block: energy = X X^T over channels, softmax, apply, residual ---
    energy = lax.dot_general(xb, xb, (((0,), (0,)), ((), ())),
                             preferred_element_type=jnp.float32)   # (C, C)
    m = jnp.max(energy, axis=-1, keepdims=True)
    pe = jnp.exp(energy - m)
    attn = (pe / jnp.sum(pe, axis=-1, keepdims=True)).astype(jnp.bfloat16)
    ca_out = lax.dot_general(xb, attn, (((1,), (1,)), ((), ())),
                             preferred_element_type=jnp.float32)   # X @ A^T
    cab = gamma_ca_ref[0] * ca_out + x                             # (S, C) f32
    cb = cab.astype(jnp.bfloat16)

    # --- SA_Block: 1x1-conv projections (head dim zero-padded to C8p) ---
    q = (jnp.dot(cb, wq_ref[...], preferred_element_type=jnp.float32)
         + bq_ref[...]).astype(jnp.bfloat16)
    k = (jnp.dot(cb, wk_ref[...], preferred_element_type=jnp.float32)
         + bk_ref[...]).astype(jnp.bfloat16)
    v = (jnp.dot(cb, wv_ref[...], preferred_element_type=jnp.float32)
         + bv_ref[...]).astype(jnp.bfloat16)

    s = lax.dot_general(q, k, (((1,), (1,)), ((), ())),
                        preferred_element_type=jnp.float32)        # (S, S)
    sm = jnp.max(s, axis=-1, keepdims=True)
    ps = jnp.exp(s - sm)
    p = (ps * pl.reciprocal(jnp.sum(ps, axis=-1, keepdims=True), approx=True)
         ).astype(jnp.bfloat16)
    out = jnp.dot(p, v, preferred_element_type=jnp.float32)         # (S, C)
    o_ref[0] = (gamma_sa_ref[0] * out + cab).astype(o_ref.dtype)


def _positioning_fused(x, p):
    B, S, C = x.shape
    C8p = p["wq"].shape[1]
    return pl.pallas_call(
        _fused_kernel,
        out_shape=jax.ShapeDtypeStruct((B, S, C), jnp.float32),
        grid=(B,),
        in_specs=[
            pl.BlockSpec(memory_space=pltpu.MemorySpace.SMEM),   # gamma_ca
            pl.BlockSpec(memory_space=pltpu.MemorySpace.SMEM),   # gamma_sa
            pl.BlockSpec((1, S, C), lambda b: (b, 0, 0)),        # x
            pl.BlockSpec((C, C8p), lambda b: (0, 0)),            # wq (bf16)
            pl.BlockSpec((1, C8p), lambda b: (0, 0)),            # bq
            pl.BlockSpec((C, C8p), lambda b: (0, 0)),            # wk (bf16)
            pl.BlockSpec((1, C8p), lambda b: (0, 0)),            # bk
            pl.BlockSpec((C, C), lambda b: (0, 0)),              # wv (bf16)
            pl.BlockSpec((1, C), lambda b: (0, 0)),              # bv
        ],
        out_specs=pl.BlockSpec((1, S, C), lambda b: (b, 0, 0)),
        compiler_params=_compiler_params(("parallel",)),
    )(p["gamma_ca"], p["gamma_sa"], x, p["wq"], p["bq"], p["wk"], p["bk"],
      p["wv"], p["bv"])


# ----------------------------- tiled-path kernels --------------------------- #

def _ca_attn_kernel(x_ref, attn_ref, acc_ref):
    """Accumulate energy = X^T X over spatial tiles; row softmax in epilogue.

    Output is bf16, so the f32 accumulator stays in a VMEM scratch.
    """
    s_idx = pl.program_id(1)

    @pl.when(s_idx == 0)
    def _():
        acc_ref[...] = jnp.zeros_like(acc_ref)

    xb = x_ref[0].astype(jnp.bfloat16)                        # (ts, C)
    acc_ref[...] += lax.dot_general(
        xb, xb, (((0,), (0,)), ((), ())), preferred_element_type=jnp.float32)

    @pl.when(s_idx == pl.num_programs(1) - 1)
    def _():
        e = acc_ref[...]                                      # (C, C) f32
        m = jnp.max(e, axis=-1, keepdims=True)
        p = jnp.exp(e - m)
        attn_ref[0] = (p / jnp.sum(p, axis=-1, keepdims=True)).astype(attn_ref.dtype)


def _ca_apply_kv_kernel(gamma_ref, x_ref, attn_ref, wk_ref, bk_ref, wv_ref, bv_ref,
                        cab_ref, k_ref, v_ref):
    """cab = gamma_ca * (X @ A^T) + X, plus the SA key/value projections."""
    x = x_ref[0]                                              # (ts, C) f32
    xb = x.astype(jnp.bfloat16)
    a = attn_ref[0]                                           # (C, C) bf16
    ca_out = lax.dot_general(xb, a, (((1,), (1,)), ((), ())),
                             preferred_element_type=jnp.float32)
    cab = gamma_ref[0] * ca_out + x
    cab_ref[0] = cab.astype(cab_ref.dtype)                    # f32 residual

    cb = cab.astype(jnp.bfloat16)
    k_ref[0] = (jnp.dot(cb, wk_ref[...], preferred_element_type=jnp.float32)
                + bk_ref[...]).astype(k_ref.dtype)            # bf16
    v_ref[0] = (jnp.dot(cb, wv_ref[...], preferred_element_type=jnp.float32)
                + bv_ref[...]).astype(v_ref.dtype)            # bf16


def _sa_flash_kernel(gamma_ref, cab_ref, wq_ref, bq_ref, k_ref, v_ref, o_ref,
                     q_sc, m_sc, l_sc, acc_sc):
    """Flash-style spatial attention with fused q-projection and residual."""
    j = pl.program_id(2)

    @pl.when(j == 0)
    def _():
        cb = cab_ref[0].astype(jnp.bfloat16)
        q = (jnp.dot(cb, wq_ref[...], preferred_element_type=jnp.float32)
             + bq_ref[...])
        q_sc[...] = q.astype(q_sc.dtype)                      # bf16, lane-dense
        m_sc[...] = jnp.full_like(m_sc, -jnp.inf)
        l_sc[...] = jnp.zeros_like(l_sc)
        acc_sc[...] = jnp.zeros_like(acc_sc)

    s = lax.dot_general(q_sc[...], k_ref[0], (((1,), (1,)), ((), ())),
                        preferred_element_type=jnp.float32)   # (tq, tk)

    m_prev = m_sc[...]
    m_new = jnp.maximum(m_prev, jnp.max(s, axis=-1, keepdims=True))
    alpha = jnp.exp(m_prev - m_new)
    p = jnp.exp(s - m_new)
    l_sc[...] = alpha * l_sc[...] + jnp.sum(p, axis=-1, keepdims=True)
    acc_sc[...] = alpha * acc_sc[...] + jnp.dot(
        p.astype(jnp.bfloat16), v_ref[0], preferred_element_type=jnp.float32)
    m_sc[...] = m_new

    @pl.when(j == pl.num_programs(2) - 1)
    def _():
        out = acc_sc[...] * pl.reciprocal(l_sc[...], approx=True)
        o_ref[0] = (gamma_ref[0] * out + cab_ref[0]).astype(o_ref.dtype)


# ----------------------------- tiled-path wrappers --------------------------- #

def ca_attention(x):
    """x: (B, S, C) f32 -> bf16 attention (B, C, C) = softmax(X X^T) rows."""
    B, S, C = x.shape
    ts = _pick_tile(S, _CA_TILES)
    return pl.pallas_call(
        _ca_attn_kernel,
        out_shape=jax.ShapeDtypeStruct((B, C, C), jnp.bfloat16),
        grid=(B, S // ts),
        in_specs=[pl.BlockSpec((1, ts, C), lambda b, s: (b, s, 0))],
        out_specs=pl.BlockSpec((1, C, C), lambda b, s: (b, 0, 0)),
        scratch_shapes=[pltpu.VMEM((C, C), jnp.float32)],
        compiler_params=_compiler_params(("parallel", "arbitrary")),
    )(x)


def ca_apply_and_kv(x, attn, p):
    """Returns (cab f32 (B,S,C), k bf16 (B,S,C8p), v bf16 (B,S,C))."""
    B, S, C = x.shape
    C8p = p["wk"].shape[1]
    ts = _pick_tile(S, _CA_TILES)
    tile_c = pl.BlockSpec((1, ts, C), lambda b, s: (b, s, 0))
    tile_c8 = pl.BlockSpec((1, ts, C8p), lambda b, s: (b, s, 0))
    return pl.pallas_call(
        _ca_apply_kv_kernel,
        out_shape=(jax.ShapeDtypeStruct((B, S, C), jnp.float32),
                   jax.ShapeDtypeStruct((B, S, C8p), jnp.bfloat16),
                   jax.ShapeDtypeStruct((B, S, C), jnp.bfloat16)),
        grid=(B, S // ts),
        in_specs=[
            pl.BlockSpec(memory_space=pltpu.MemorySpace.SMEM),   # gamma_ca
            tile_c,                                              # x
            pl.BlockSpec((1, C, C), lambda b, s: (b, 0, 0)),     # attn (bf16)
            pl.BlockSpec((C, C8p), lambda b, s: (0, 0)),         # wk (bf16)
            pl.BlockSpec((1, C8p), lambda b, s: (0, 0)),         # bk
            pl.BlockSpec((C, C), lambda b, s: (0, 0)),           # wv (bf16)
            pl.BlockSpec((1, C), lambda b, s: (0, 0)),           # bv
        ],
        out_specs=(tile_c, tile_c8, tile_c),
        compiler_params=_compiler_params(("parallel", "parallel")),
    )(p["gamma_ca"], x, attn, p["wk"], p["bk"], p["wv"], p["bv"])


def sa_flash(cab, k, v, p):
    """Flash spatial attention: softmax(q k^T) v, scaled + residual on cab."""
    B, S, C = cab.shape
    C8p = k.shape[2]
    tq = _pick_tile(S, _TQ_TILES)
    tk = _pick_tile_any(S, _TK_TILES)        # bigger kv tile -> fewer inner steps
    return pl.pallas_call(
        _sa_flash_kernel,
        out_shape=jax.ShapeDtypeStruct((B, S, C), jnp.float32),
        grid=(B, S // tq, S // tk),
        in_specs=[
            pl.BlockSpec(memory_space=pltpu.MemorySpace.SMEM),       # gamma_sa
            pl.BlockSpec((1, tq, C), lambda b, i, j: (b, i, 0)),     # cab
            pl.BlockSpec((C, C8p), lambda b, i, j: (0, 0)),          # wq (bf16)
            pl.BlockSpec((1, C8p), lambda b, i, j: (0, 0)),          # bq
            pl.BlockSpec((1, tk, C8p), lambda b, i, j: (b, j, 0)),   # k (bf16)
            pl.BlockSpec((1, tk, C), lambda b, i, j: (b, j, 0)),     # v (bf16)
        ],
        out_specs=pl.BlockSpec((1, tq, C), lambda b, i, j: (b, i, 0)),
        scratch_shapes=[
            pltpu.VMEM((tq, C8p), jnp.bfloat16),   # q (lane-dense)
            pltpu.VMEM((tq, 1), jnp.float32),      # running max
            pltpu.VMEM((tq, 1), jnp.float32),      # running denom
            pltpu.VMEM((tq, C), jnp.float32),      # output accumulator
        ],
        compiler_params=_compiler_params(("parallel", "parallel", "arbitrary")),
    )(p["gamma_sa"], cab, p["wq"], p["bq"], k, v)


# --------------------------------- params ----------------------------------- #

def init_params(key, C):
    """SA_Block 1x1-conv weights (matmul layout, f32) + CA/SA gammas."""
    C8 = C // 8
    ks = jax.random.split(key, 6)

    def u(k, shape, fan_in):
        b = 1.0 / math.sqrt(fan_in)
        return jax.random.uniform(k, shape, jnp.float32, -b, b)

    return {
        "gamma_ca": jnp.ones((1,), jnp.float32),
        "gamma_sa": jnp.ones((1,), jnp.float32),
        "wq": u(ks[0], (C, C8), C), "bq": u(ks[1], (C8,), C),
        "wk": u(ks[2], (C, C8), C), "bk": u(ks[3], (C8,), C),
        "wv": u(ks[4], (C, C), C), "bv": u(ks[5], (C,), C),
    }


def _prepare_params(params):
    """bf16 matmul weights; zero-pad head dim C//8 up to a multiple of 128."""
    C8 = params["wq"].shape[1]
    C8p = ((C8 + 127) // 128) * 128
    pad = C8p - C8

    def pad_w(w):
        return jnp.pad(w, ((0, 0), (0, pad))).astype(jnp.bfloat16)

    def pad_b(b):
        return jnp.pad(b.reshape(1, -1), ((0, 0), (0, pad))).astype(jnp.float32)

    return {
        "gamma_ca": params["gamma_ca"].astype(jnp.float32),
        "gamma_sa": params["gamma_sa"].astype(jnp.float32),
        "wq": pad_w(params["wq"]), "bq": pad_b(params["bq"]),
        "wk": pad_w(params["wk"]), "bk": pad_b(params["bk"]),
        "wv": params["wv"].astype(jnp.bfloat16),
        "bv": params["bv"].reshape(1, -1).astype(jnp.float32),
    }


# ------------------------------- forward pass ------------------------------- #

@functools.partial(jax.jit, static_argnames=("force_tiled",))
def positioning_forward(x_nchw, params, *, force_tiled=False):
    """Positioning.forward: sab(cab(x)).  Input/output NCHW, like PyTorch."""
    B, C, H, W = x_nchw.shape
    S = H * W
    p = _prepare_params(params)
    C8p = p["wq"].shape[1]
    x = jnp.transpose(x_nchw, (0, 2, 3, 1)).reshape(B, S, C).astype(jnp.float32)

    if (not force_tiled) and _fused_fits(S, C, C8p):
        sab = _positioning_fused(x, p)                      # single fused kernel
    else:
        attn = ca_attention(x)                              # (B, C, C) bf16
        cab, k, v = ca_apply_and_kv(x, attn, p)             # f32 / bf16 / bf16
        sab = sa_flash(cab, k, v, p)                        # (B, S, C) f32

    return jnp.transpose(sab.reshape(B, H, W, C), (0, 3, 1, 2))


# ----------------------------- pure-JAX reference --------------------------- #

def positioning_reference(x_nchw, params):
    B, C, H, W = x_nchw.shape
    S = H * W
    x = x_nchw.reshape(B, C, S).astype(jnp.float32)
    energy = jnp.einsum("bcs,bds->bcd", x, x)
    attn = jax.nn.softmax(energy, axis=-1)
    cab = params["gamma_ca"][0] * jnp.einsum("bcd,bds->bcs", attn, x) + x
    cl = jnp.transpose(cab, (0, 2, 1))                       # (B, S, C)
    q = cl @ params["wq"] + params["bq"]
    k = cl @ params["wk"] + params["bk"]
    v = cl @ params["wv"] + params["bv"]
    e = jnp.einsum("bic,bjc->bij", q, k)
    a = jax.nn.softmax(e, axis=-1)
    out = jnp.einsum("bij,bjc->bic", a, v)
    sab = params["gamma_sa"][0] * out + cl
    return jnp.transpose(sab, (0, 2, 1)).reshape(B, C, H, W)


# ----------------------------------- main ------------------------------------ #

def _check(out, ref):
    err = jnp.abs(out - ref)
    max_err = float(jnp.max(err))
    mean_err = float(jnp.mean(err))
    assert bool(jnp.isfinite(out).all())
    # bf16 operands + approx reciprocal -> small numerical deviation is expected.
    assert max_err < 0.5 and mean_err < 0.05, (max_err, mean_err)


if __name__ == "__main__":
    key = jax.random.PRNGKey(0)
    kx1, kx2, kp = jax.random.split(key, 3)

    # Shape 1: small problem -> fully fused single-kernel path.
    B, C, H, W = 2, 64, 16, 16               # C must be divisible by 8 (SA_Block)
    params = init_params(kp, C)
    x1 = jax.random.normal(kx1, (B, C, H, W), jnp.float32)     # NCHW like PyTorch
    out1 = jax.block_until_ready(positioning_forward(x1, params))
    assert out1.shape == (B, C, H, W), out1.shape
    _check(out1, positioning_reference(x1, params))

    # Shape 2: larger spatial extent -> tiled 3-kernel path (flash SA).
    B2, H2, W2 = 1, 32, 32
    x2 = jax.random.normal(kx2, (B2, C, H2, W2), jnp.float32)
    out2 = jax.block_until_ready(positioning_forward(x2, params, force_tiled=True))
    assert out2.shape == (B2, C, H2, W2), out2.shape
    _check(out2, positioning_reference(x2, params))

    print("KERNEL_OK")
</pallas_src>

<mosaic_0001>
module attributes {stable_mosaic.version = 11 : i64} {
  func.func @_fused_kernel(%arg0: i32, %arg1: memref<1xf32, #tpu.memory_space<smem>>, %arg2: memref<1xf32, #tpu.memory_space<smem>>, %arg3: memref<1x256x64xf32, #tpu.memory_space<vmem>>, %arg4: memref<64x128xbf16, #tpu.memory_space<vmem>>, %arg5: memref<1x128xf32, #tpu.memory_space<vmem>>, %arg6: memref<64x128xbf16, #tpu.memory_space<vmem>>, %arg7: memref<1x128xf32, #tpu.memory_space<vmem>>, %arg8: memref<64x64xbf16, #tpu.memory_space<vmem>>, %arg9: memref<1x64xf32, #tpu.memory_space<vmem>>, %arg10: memref<1x256x64xf32, #tpu.memory_space<vmem>>) attributes {dimension_semantics = [#tpu.dimension_semantics<parallel>], iteration_bounds = array<i64: 2>, scalar_prefetch = 0 : i64, scratch_operands = 0 : i64, tpu.core_type = #tpu.core_type<tc>, window_params = [{transform_indices = @transform_0, window_bounds = array<i64: 1>}, {transform_indices = @transform_1, window_bounds = array<i64: 1>}, {transform_indices = @transform_2, window_bounds = array<i64: 1, 256, 64>}, {pipeline_mode = #tpu.pipeline_mode<synchronous>, transform_indices = @transform_3, window_bounds = array<i64: 64, 128>}, {pipeline_mode = #tpu.pipeline_mode<synchronous>, transform_indices = @transform_4, window_bounds = array<i64: 1, 128>}, {pipeline_mode = #tpu.pipeline_mode<synchronous>, transform_indices = @transform_5, window_bounds = array<i64: 64, 128>}, {pipeline_mode = #tpu.pipeline_mode<synchronous>, transform_indices = @transform_6, window_bounds = array<i64: 1, 128>}, {pipeline_mode = #tpu.pipeline_mode<synchronous>, transform_indices = @transform_7, window_bounds = array<i64: 64, 64>}, {pipeline_mode = #tpu.pipeline_mode<synchronous>, transform_indices = @transform_8, window_bounds = array<i64: 1, 64>}, {transform_indices = @transform_9, window_bounds = array<i64: 1, 256, 64>}]} {
    %c0 = arith.constant 0 : index
    %c0_0 = arith.constant 0 : index
    %c0_1 = arith.constant 0 : index
    %0 = vector.load %arg3[%c0, %c0_0, %c0_1] : memref<1x256x64xf32, #tpu.memory_space<vmem>>, vector<1x256x64xf32>
    %1 = vector.shape_cast %0 : vector<1x256x64xf32> to vector<256x64xf32>
    %2 = arith.truncf %1 : vector<256x64xf32> to vector<256x64xbf16>
    %cst = arith.constant dense<0.000000e+00> : vector<64x64xf32>
    %3 = tpu.matmul %2, %2, %cst {dimension_numbers = #tpu.dot_dimension_numbers<[0], [0], [1], [1], [0, 1, 1, 1], [], []>} : vector<256x64xbf16>, vector<256x64xbf16>, vector<64x64xf32> -> vector<64x64xf32>
    %cst_2 = arith.constant dense<0xFF800000> : vector<64xf32>
    %4 = vector.multi_reduction <maximumf>, %3, %cst_2 [1] : vector<64x64xf32> to vector<64xf32>
    %5 = vector.shape_cast %4 : vector<64xf32> to vector<64x1xf32>
    %6 = vector.broadcast %5 : vector<64x1xf32> to vector<64x64xf32>
    %7 = arith.subf %3, %6 : vector<64x64xf32>
    %8 = math.exp %7 : vector<64x64xf32>
    %cst_3 = arith.constant dense<0.000000e+00> : vector<64xf32>
    %9 = vector.multi_reduction <add>, %8, %cst_3 [1] : vector<64x64xf32> to vector<64xf32>
    %10 = vector.shape_cast %9 : vector<64xf32> to vector<64x1xf32>
    %11 = vector.broadcast %10 : vector<64x1xf32> to vector<64x64xf32>
    %12 = arith.divf %8, %11 : vector<64x64xf32>
    %13 = arith.truncf %12 : vector<64x64xf32> to vector<64x64xbf16>
    %cst_4 = arith.constant dense<0.000000e+00> : vector<256x64xf32>
    %14 = tpu.matmul %2, %13, %cst_4 {dimension_numbers = #tpu.dot_dimension_numbers<[1], [1], [0], [0], [0, 0, 1, 0], [], []>} : vector<256x64xbf16>, vector<64x64xbf16>, vector<256x64xf32> -> vector<256x64xf32>
    %c0_5 = arith.constant 0 : index
    %15 = memref.load %arg1[%c0_5] : memref<1xf32, #tpu.memory_space<smem>>
    %16 = vector.broadcast %15 : f32 to vector<256x64xf32>
    %17 = arith.mulf %16, %14 : vector<256x64xf32>
    %18 = arith.addf %17, %1 : vector<256x64xf32>
    %19 = arith.truncf %18 : vector<256x64xf32> to vector<256x64xbf16>
    %c0_6 = arith.constant 0 : index
    %c0_7 = arith.constant 0 : index
    %20 = vector.load %arg4[%c0_6, %c0_7] : memref<64x128xbf16, #tpu.memory_space<vmem>>, vector<64x128xbf16>
    %cst_8 = arith.constant dense<0.000000e+00> : vector<256x128xf32>
    %21 = tpu.matmul %19, %20, %cst_8 {dimension_numbers = #tpu.dot_dimension_numbers<[1], [0], [0], [1], [0, 0, 1, 1], [], []>} : vector<256x64xbf16>, vector<64x128xbf16>, vector<256x128xf32> -> vector<256x128xf32>
    %c0_9 = arith.constant 0 : index
    %c0_10 = arith.constant 0 : index
    %22 = vector.load %arg5[%c0_9, %c0_10] : memref<1x128xf32, #tpu.memory_space<vmem>>, vector<1x128xf32>
    %23 = vector.broadcast %22 : vector<1x128xf32> to vector<256x128xf32>
    %24 = arith.addf %21, %23 : vector<256x128xf32>
    %25 = arith.truncf %24 : vector<256x128xf32> to vector<256x128xbf16>
    %c0_11 = arith.constant 0 : index
    %c0_12 = arith.constant 0 : index
    %26 = vector.load %arg6[%c0_11, %c0_12] : memref<64x128xbf16, #tpu.memory_space<vmem>>, vector<64x128xbf16>
    %cst_13 = arith.constant dense<0.000000e+00> : vector<256x128xf32>
    %27 = tpu.matmul %19, %26, %cst_13 {dimension_numbers = #tpu.dot_dimension_numbers<[1], [0], [0], [1], [0, 0, 1, 1], [], []>} : vector<256x64xbf16>, vector<64x128xbf16>, vector<256x128xf32> -> vector<256x128xf32>
    %c0_14 = arith.constant 0 : index
    %c0_15 = arith.constant 0 : index
    %28 = vector.load %arg7[%c0_14, %c0_15] : memref<1x128xf32, #tpu.memory_space<vmem>>, vector<1x128xf32>
    %29 = vector.broadcast %28 : vector<1x128xf32> to vector<256x128xf32>
    %30 = arith.addf %27, %29 : vector<256x128xf32>
    %31 = arith.truncf %30 : vector<256x128xf32> to vector<256x128xbf16>
    %c0_16 = arith.constant 0 : index
    %c0_17 = arith.constant 0 : index
    %32 = vector.load %arg8[%c0_16, %c0_17] : memref<64x64xbf16, #tpu.memory_space<vmem>>, vector<64x64xbf16>
    %cst_18 = arith.constant dense<0.000000e+00> : vector<256x64xf32>
    %33 = tpu.matmul %19, %32, %cst_18 {dimension_numbers = #tpu.dot_dimension_numbers<[1], [0], [0], [1], [0, 0, 1, 1], [], []>} : vector<256x64xbf16>, vector<64x64xbf16>, vector<256x64xf32> -> vector<256x64xf32>
    %c0_19 = arith.constant 0 : index
    %c0_20 = arith.constant 0 : index
    %34 = vector.load %arg9[%c0_19, %c0_20] : memref<1x64xf32, #tpu.memory_space<vmem>>, vector<1x64xf32>
    %35 = vector.broadcast %34 : vector<1x64xf32> to vector<256x64xf32>
    %36 = arith.addf %33, %35 : vector<256x64xf32>
    %37 = arith.truncf %36 : vector<256x64xf32> to vector<256x64xbf16>
    %cst_21 = arith.constant dense<0.000000e+00> : vector<256x256xf32>
    %38 = tpu.matmul %25, %31, %cst_21 {dimension_numbers = #tpu.dot_dimension_numbers<[1], [1], [0], [0], [0, 0, 1, 0], [], []>} : vector<256x128xbf16>, vector<256x128xbf16>, vector<256x256xf32> -> vector<256x256xf32>
    %cst_22 = arith.constant dense<0xFF800000> : vector<256xf32>
    %39 = vector.multi_reduction <maximumf>, %38, %cst_22 [1] : vector<256x256xf32> to vector<256xf32>
    %40 = vector.shape_cast %39 : vector<256xf32> to vector<256x1xf32>
    %41 = vector.broadcast %40 : vector<256x1xf32> to vector<256x256xf32>
    %42 = arith.subf %38, %41 : vector<256x256xf32>
    %43 = math.exp %42 : vector<256x256xf32>
    %cst_23 = arith.constant dense<0.000000e+00> : vector<256xf32>
    %44 = vector.multi_reduction <add>, %43, %cst_23 [1] : vector<256x256xf32> to vector<256xf32>
    %45 = vector.shape_cast %44 : vector<256xf32> to vector<256x1xf32>
    %46 = tpu.reciprocal %45 {approx = true} : vector<256x1xf32> -> vector<256x1xf32>
    %47 = vector.broadcast %46 : vector<256x1xf32> to vector<256x256xf32>
    %48 = arith.mulf %43, %47 : vector<256x256xf32>
    %49 = arith.truncf %48 : vector<256x256xf32> to vector<256x256xbf16>
    %cst_24 = arith.constant dense<0.000000e+00> : vector<256x64xf32>
    %50 = tpu.matmul %49, %37, %cst_24 {dimension_numbers = #tpu.dot_dimension_numbers<[1], [0], [0], [1], [0, 0, 1, 1], [], []>} : vector<256x256xbf16>, vector<256x64xbf16>, vector<256x64xf32> -> vector<256x64xf32>
    %c0_25 = arith.constant 0 : index
    %51 = memref.load %arg2[%c0_25] : memref<1xf32, #tpu.memory_space<smem>>
    %52 = vector.broadcast %51 : f32 to vector<256x64xf32>
    %53 = arith.mulf %52, %50 : vector<256x64xf32>
    %54 = arith.addf %53, %18 : vector<256x64xf32>
    %c0_26 = arith.constant 0 : index
    %c0_27 = arith.constant 0 : index
    %c0_28 = arith.constant 0 : index
    %55 = vector.load %arg10[%c0_26, %c0_27, %c0_28] : memref<1x256x64xf32, #tpu.memory_space<vmem>>, vector<1x256x64xf32>
    %56 = vector.shape_cast %55 : vector<1x256x64xf32> to vector<256x64xf32>
    %57 = vector.shape_cast %54 : vector<256x64xf32> to vector<1x256x64xf32>
    tpu.vector_store %arg10[%c0_26, %c0_27, %c0_28], %57 {strides = array<i32>} : memref<1x256x64xf32, #tpu.memory_space<vmem>>, vector<1x256x64xf32>,
    return
  }
  func.func @transform_0(%arg0: i32) -> i32 {
    %c0_i32 = arith.constant 0 : i32
    %c0_i32_0 = arith.constant 0 : i32
    return %c0_i32 : i32
  }
  func.func @transform_1(%arg0: i32) -> i32 {
    %c0_i32 = arith.constant 0 : i32
    %c0_i32_0 = arith.constant 0 : i32
    return %c0_i32 : i32
  }
  func.func @transform_2(%arg0: i32) -> (i32, i32, i32) {
    %c0_i32 = arith.constant 0 : i32
    %c0_i32_0 = arith.constant 0 : i32
    %c0_i32_1 = arith.constant 0 : i32
    return %arg0, %c0_i32, %c0_i32_0 : i32, i32, i32
  }
  func.func @transform_3(%arg0: i32) -> (i32, i32) {
    %c0_i32 = arith.constant 0 : i32
    %c0_i32_0 = arith.constant 0 : i32
    %c0_i32_1 = arith.constant 0 : i32
    return %c0_i32, %c0_i32_0 : i32, i32
  }
  func.func @transform_4(%arg0: i32) -> (i32, i32) {
    %c0_i32 = arith.constant 0 : i32
    %c0_i32_0 = arith.constant 0 : i32
    %c0_i32_1 = arith.constant 0 : i32
    return %c0_i32, %c0_i32_0 : i32, i32
  }
  func.func @transform_5(%arg0: i32) -> (i32, i32) {
    %c0_i32 = arith.constant 0 : i32
    %c0_i32_0 = arith.constant 0 : i32
    %c0_i32_1 = arith.constant 0 : i32
    return %c0_i32, %c0_i32_0 : i32, i32
  }
  func.func @transform_6(%arg0: i32) -> (i32, i32) {
    %c0_i32 = arith.constant 0 : i32
    %c0_i32_0 = arith.constant 0 : i32
    %c0_i32_1 = arith.constant 0 : i32
    return %c0_i32, %c0_i32_0 : i32, i32
  }
  func.func @transform_7(%arg0: i32) -> (i32, i32) {
    %c0_i32 = arith.constant 0 : i32
    %c0_i32_0 = arith.constant 0 : i32
    %c0_i32_1 = arith.constant 0 : i32
    return %c0_i32, %c0_i32_0 : i32, i32
  }
  func.func @transform_8(%arg0: i32) -> (i32, i32) {
    %c0_i32 = arith.constant 0 : i32
    %c0_i32_0 = arith.constant 0 : i32
    %c0_i32_1 = arith.constant 0 : i32
    return %c0_i32, %c0_i32_0 : i32, i32
  }
  func.func @transform_9(%arg0: i32) -> (i32, i32, i32) {
    %c0_i32 = arith.constant 0 : i32
    %c0_i32_0 = arith.constant 0 : i32
    %c0_i32_1 = arith.constant 0 : i32
    return %arg0, %c0_i32, %c0_i32_0 : i32, i32, i32
  }
}

</mosaic_0001>

<llo_original>
// kernel: positioning_forward.1
$region0: #{positioning_forward.1}
  #allocation0 [shape = 'u32[]', space=smem, size = 0x4, offset = 0x4, fixed_abs, tag = 'smem constant byte address 0x4 - core index']
  #allocation1 [shape = 'u32[72,128]{1,0:T(1,128)}', space=vmem, size = 0x9000, scoped, tag = 'internal scratch']
  #allocation2 [shape = 'f32[1]{0:T(128)S(6)}', space=smem, size = 0x200, scoped, tag = 'scoped memory for positioning_forward.1']
  #allocation3 [shape = 'f32[1]{0:T(128)S(6)}', space=smem, size = 0x200, scoped, tag = 'scoped memory for positioning_forward.1']
  %s0 = inlined_call_operand.<no memory space> [shape: f32[1], index: 0, kind: input, shape index: {}]
  %s1 = inlined_call_operand.<no memory space> [shape: f32[1], index: 1, kind: input, shape index: {}]
  %s2 = inlined_call_operand.hbm [shape: f32[2,256,64], index: 2, kind: input, shape index: {}]
  %s3 = inlined_call_operand.vmem [shape: bf16[64,128], index: 3, kind: input, shape index: {}]
  %s4 = inlined_call_operand.vmem [shape: f32[1,128], index: 4, kind: input, shape index: {}]
  %s5 = inlined_call_operand.vmem [shape: bf16[64,128], index: 5, kind: input, shape index: {}]
  %s6 = inlined_call_operand.vmem [shape: f32[1,128], index: 6, kind: input, shape index: {}]
  %s7 = inlined_call_operand.vmem [shape: bf16[64,64], index: 7, kind: input, shape index: {}]
  %s8 = inlined_call_operand.vmem [shape: f32[1,64], index: 8, kind: input, shape index: {}]
  %s9 = inlined_call_operand.hbm [shape: f32[2,256,64], index: 9, kind: output, shape index: {}]
  %s10 = sld [smem:[#allocation0]]
  $region73: #{positioning_forward.1} parent=0
    _
  %s12 = ssub.s32 1, %s10
  %s13 = scalar_select 0, %s12, %s10
  %14 = sst [smem:[#allocation2]] %s0
  %15 = sst [smem:[#allocation3]] %s1
  $region1: #{positioning_forward.1} parent=0
    #allocation4 [shape = 'u8[262144]{0}', space=vmem, size = 0x40000, scoped, tag = 'input window, operand 2']
    #allocation5 [shape = 's32[2]{0}', space=sflag, size = 0x8, scoped, tag = 'scoped memory for positioning_forward.1']
    #allocation6 [shape = 's32[2]{0}', space=sflag, size = 0x8, scoped, tag = 'scoped memory for positioning_forward.1']
    #allocation7 [shape = 'u8[262144]{0}', space=vmem, size = 0x40000, scoped, tag = 'output window, operand 0']
    %16 = vsyncpa [#allocation5], 0
    %s17 = scalar_lea.sflag [#allocation5], 1
    %18 = vsyncpa %s17, 0
    %19 = vsyncpa [#allocation6], 0
    %s20 = scalar_lea.sflag [#allocation6], 1
    %21 = vsyncpa %s20, 0
    loop: start=0, step=1, limit=4
    $region2: #{positioning_forward.1} parent=1 // loop_pre_header
      _
    $region3: #{positioning_forward.1} parent=1 // loop_header
      %s23 = sphi 0, %s27
      %p24 = scmp.ge.s32.totalorder %s23, 4
      %s31 = sphi 0, %s31
      %s33 = sphi 0, %s31
      %s34 = sphi 0, %s33
      %s48 = sphi 0, %s34
      %s52 = sphi 0, %s52
      %s54 = sphi 0, %s52
      %s55 = sphi 0, %s54
      %s69 = sphi 0, %s55
      %s75 = sphi 0, %s77
      %s78 = sphi 0, %s75
      %s79 = sphi 0, %s78
      %s95 = sphi 0, %s79
      %s99 = sphi 0, %s99
      %s101 = sphi 0, %s99
      %s102 = sphi 0, %s101
      %s116 = sphi 0, %s102
      %s120 = sphi 0, %s120
      %s122 = sphi 0, %s120
      %s123 = sphi 0, %s122
      %s137 = sphi 0, %s123
      %s141 = sphi 0, %s141
      %s143 = sphi 0, %s141
      %s144 = sphi 0, %s143
      %s158 = sphi 0, %s144
      %s162 = sphi 0, %s162
      %s164 = sphi 0, %s162
      %s165 = sphi 0, %s164
      %s179 = sphi 0, %s165
      %s183 = sphi 0, %s183
      %s185 = sphi 0, %s183
      %s186 = sphi 0, %s185
      %s200 = sphi 0, %s186
      %s204 = sphi 0, %s204
      %s206 = sphi 0, %s204
      %s207 = sphi 0, %s206
      %s221 = sphi 0, %s207
      %s227 = sphi 0, %s229
      %s230 = sphi 0, %s227
      %s231 = sphi 0, %s230
      %s247 = sphi 0, %s231
    $region4: #{positioning_forward.1} parent=1 // loop_header_branch
      %26 = sbr.rel (%p24) target = $region8
    $region5: #{positioning_forward.1} parent=1 // loop_body
      %s28 = ssub.s32 %s23, 1
      %s29 = ssub.s32 %s23, 2
      %s30 = sadd.s32 %s23, 1
      %s32 = sadd.s32 %s31, 1
      %p35 = scmp.eq.s32.totalorder %s23, 1
      %p36 = scmp.ne.s32.totalorder %s31, %s33
      %p37 = scmp.eq.s32.totalorder %s23, 0
      %p38 = por %p36, %p37
      %p39 = scmp.ne.s32.totalorder %s31, %s33
      %p40 = scmp.eq.s32.totalorder %s28, 1
      %p41 = por %p39, %p40
      %p42 = scmp.ne.s32.totalorder %s33, %s34
      %p43 = scmp.eq.s32.totalorder %s28, 0
      %p44 = por %p42, %p43
      %p45 = scmp.ne.s32.totalorder %s33, %s34
      %p46 = scmp.eq.s32.totalorder %s29, 1
      %p47 = por %p45, %p46
      %p49 = scmp.ne.s32.totalorder %s34, %s48
      %p50 = scmp.eq.s32.totalorder %s29, 0
      %p51 = por %p49, %p50
      %s53 = sadd.s32 %s52, 1
      %p56 = scmp.eq.s32.totalorder %s23, 1
      %p57 = scmp.ne.s32.totalorder %s52, %s54
      %p58 = scmp.eq.s32.totalorder %s23, 0
      %p59 = por %p57, %p58
      %p60 = scmp.ne.s32.totalorder %s52, %s54
      %p61 = scmp.eq.s32.totalorder %s28, 1
      %p62 = por %p60, %p61
      %p63 = scmp.ne.s32.totalorder %s54, %s55
      %p64 = scmp.eq.s32.totalorder %s28, 0
      %p65 = por %p63, %p64
      %p66 = scmp.ne.s32.totalorder %s54, %s55
      %p67 = scmp.eq.s32.totalorder %s29, 1
      %p68 = por %p66, %p67
      %p70 = scmp.ne.s32.totalorder %s55, %s69
      %p71 = scmp.eq.s32.totalorder %s29, 0
      %p72 = por %p70, %p71
      %s73 = ssub.s32 %s23, %s30
      %p74 = scmp.eq.s32.totalorder %s73, 0
      %s76 = sadd.s32 %s75, 1
      %s77 = scalar_select %p74, %s75, %s76
      %p80 = pneg %p74
      %p81 = scmp.eq.s32.totalorder %s23, 1
      %p82 = por %p80, %p81
      %p83 = scmp.ne.s32.totalorder %s75, %s78
      %p84 = scmp.eq.s32.totalorder %s23, 0
      %p85 = por %p83, %p84
      %p86 = scmp.ne.s32.totalorder %s75, %s78
      %p87 = scmp.eq.s32.totalorder %s28, 1
      %p88 = por %p86, %p87
      %p89 = scmp.ne.s32.totalorder %s78, %s79
      %p90 = scmp.eq.s32.totalorder %s28, 0
      %p91 = por %p89, %p90
      %p92 = scmp.ne.s32.totalorder %s78, %s79
      %p93 = scmp.eq.s32.totalorder %s29, 1
      %p94 = por %p92, %p93
      %p96 = scmp.ne.s32.totalorder %s79, %s95
      %p97 = scmp.eq.s32.totalorder %s29, 0
      %p98 = por %p96, %p97
      %s100 = sadd.s32 %s99, 1
      %p103 = scmp.eq.s32.totalorder %s23, 1
      %p104 = scmp.ne.s32.totalorder %s99, %s101
      %p105 = scmp.eq.s32.totalorder %s23, 0
      %p106 = por %p104, %p105
      %p107 = scmp.ne.s32.totalorder %s99, %s101
      %p108 = scmp.eq.s32.totalorder %s28, 1
      %p109 = por %p107, %p108
      %p110 = scmp.ne.s32.totalorder %s101, %s102
      %p111 = scmp.eq.s32.totalorder %s28, 0
      %p112 = por %p110, %p111
      %p113 = scmp.ne.s32.totalorder %s101, %s102
      %p114 = scmp.eq.s32.totalorder %s29, 1
      %p115 = por %p113, %p114
      %p117 = scmp.ne.s32.totalorder %s102, %s116
      %p118 = scmp.eq.s32.totalorder %s29, 0
      %p119 = por %p117, %p118
      %s121 = sadd.s32 %s120, 1
      %p124 = scmp.eq.s32.totalorder %s23, 1
      %p125 = scmp.ne.s32.totalorder %s120, %s122
      %p126 = scmp.eq.s32.totalorder %s23, 0
      %p127 = por %p125, %p126
      %p128 = scmp.ne.s32.totalorder %s120, %s122
      %p129 = scmp.eq.s32.totalorder %s28, 1
      %p130 = por %p128, %p129
      %p131 = scmp.ne.s32.totalorder %s122, %s123
      %p132 = scmp.eq.s32.totalorder %s28, 0
      %p133 = por %p131, %p132
      %p134 = scmp.ne.s32.totalorder %s122, %s123
      %p135 = scmp.eq.s32.totalorder %s29, 1
      %p136 = por %p134, %p135
      %p138 = scmp.ne.s32.totalorder %s123, %s137
      %p139 = scmp.eq.s32.totalorder %s29, 0
      %p140 = por %p138, %p139
      %s142 = sadd.s32 %s141, 1
      %p145 = scmp.eq.s32.totalorder %s23, 1
      %p146 = scmp.ne.s32.totalorder %s141, %s143
      %p147 = scmp.eq.s32.totalorder %s23, 0
      %p148 = por %p146, %p147
      %p149 = scmp.ne.s32.totalorder %s141, %s143
      %p150 = scmp.eq.s32.totalorder %s28, 1
      %p151 = por %p149, %p150
      %p152 = scmp.ne.s32.totalorder %s143, %s144
      %p153 = scmp.eq.s32.totalorder %s28, 0
      %p154 = por %p152, %p153
      %p155 = scmp.ne.s32.totalorder %s143, %s144
      %p156 = scmp.eq.s32.totalorder %s29, 1
      %p157 = por %p155, %p156
      %p159 = scmp.ne.s32.totalorder %s144, %s158
      %p160 = scmp.eq.s32.totalorder %s29, 0
      %p161 = por %p159, %p160
      %s163 = sadd.s32 %s162, 1
      %p166 = scmp.eq.s32.totalorder %s23, 1
      %p167 = scmp.ne.s32.totalorder %s162, %s164
      %p168 = scmp.eq.s32.totalorder %s23, 0
      %p169 = por %p167, %p168
      %p170 = scmp.ne.s32.totalorder %s162, %s164
      %p171 = scmp.eq.s32.totalorder %s28, 1
      %p172 = por %p170, %p171
      %p173 = scmp.ne.s32.totalorder %s164, %s165
      %p174 = scmp.eq.s32.totalorder %s28, 0
      %p175 = por %p173, %p174
      %p176 = scmp.ne.s32.totalorder %s164, %s165
      %p177 = scmp.eq.s32.totalorder %s29, 1
      %p178 = por %p176, %p177
      %p180 = scmp.ne.s32.totalorder %s165, %s179
      %p181 = scmp.eq.s32.totalorder %s29, 0
      %p182 = por %p180, %p181
      %s184 = sadd.s32 %s183, 1
      %p187 = scmp.eq.s32.totalorder %s23, 1
      %p188 = scmp.ne.s32.totalorder %s183, %s185
      %p189 = scmp.eq.s32.totalorder %s23, 0
      %p190 = por %p188, %p189
      %p191 = scmp.ne.s32.totalorder %s183, %s185
      %p192 = scmp.eq.s32.totalorder %s28, 1
      %p193 = por %p191, %p192
      %p194 = scmp.ne.s32.totalorder %s185, %s186
      %p195 = scmp.eq.s32.totalorder %s28, 0
      %p196 = por %p194, %p195
      %p197 = scmp.ne.s32.totalorder %s185, %s186
      %p198 = scmp.eq.s32.totalorder %s29, 1
      %p199 = por %p197, %p198
      %p201 = scmp.ne.s32.totalorder %s186, %s200
      %p202 = scmp.eq.s32.totalorder %s29, 0
      %p203 = por %p201, %p202
      %s205 = sadd.s32 %s204, 1
      %p208 = scmp.eq.s32.totalorder %s23, 1
      %p209 = scmp.ne.s32.totalorder %s204, %s206
      %p210 = scmp.eq.s32.totalorder %s23, 0
      %p211 = por %p209, %p210
      %p212 = scmp.ne.s32.totalorder %s204, %s206
      %p213 = scmp.eq.s32.totalorder %s28, 1
      %p214 = por %p212, %p213
      %p215 = scmp.ne.s32.totalorder %s206, %s207
      %p216 = scmp.eq.s32.totalorder %s28, 0
      %p217 = por %p215, %p216
      %p218 = scmp.ne.s32.totalorder %s206, %s207
      %p219 = scmp.eq.s32.totalorder %s29, 1
      %p220 = por %p218, %p219
      %p222 = scmp.ne.s32.totalorder %s207, %s221
      %p223 = scmp.eq.s32.totalorder %s29, 0
      %p224 = por %p222, %p223
      %s225 = ssub.s32 %s23, %s30
      %p226 = scmp.eq.s32.totalorder %s225, 0
      %s228 = sadd.s32 %s227, 1
      %s229 = scalar_select %p226, %s227, %s228
      %p232 = pneg %p226
      %p233 = scmp.eq.s32.totalorder %s23, 1
      %p234 = por %p232, %p233
      %p235 = scmp.ne.s32.totalorder %s227, %s230
      %p236 = scmp.eq.s32.totalorder %s23, 0
      %p237 = por %p235, %p236
      %p238 = scmp.ne.s32.totalorder %s227, %s230
      %p239 = scmp.eq.s32.totalorder %s28, 1
      %p240 = por %p238, %p239
      %p241 = scmp.ne.s32.totalorder %s230, %s231
      %p242 = scmp.eq.s32.totalorder %s28, 0
      %p243 = por %p241, %p242
      %p244 = scmp.ne.s32.totalorder %s230, %s231
      %p245 = scmp.eq.s32.totalorder %s29, 1
      %p246 = por %p244, %p245
      %p248 = scmp.ne.s32.totalorder %s231, %s247
      %p249 = scmp.eq.s32.totalorder %s29, 0
      %p250 = por %p248, %p249
      %p251 = scmp.le.s32.totalorder 1, %s23
      %p252 = scmp.lt.s32.totalorder %s23, 3
      %p253 = pnand %p251, %p252
      %p254 = pneg %p253
      // Predicated region
      $region9: #{positioning_forward.1} parent=5 // pred_check
        _
      $region10: #{positioning_forward.1} parent=5 // pred_check_branch
        %256 = sbr.rel (%p253) target = $region12
      $region11: #{positioning_forward.1} parent=5 // pred_region
        %s257 = ssub.s32 %s23, 1
        // Predicated region
        $region13: #{positioning_forward.1} parent=11 // pred_check
          %p258 = pneg %p44
        $region14: #{positioning_forward.1} parent=11 // pred_check_branch
          %260 = sbr.rel (%p258) target = $region16
        $region15: #{positioning_forward.1} parent=11 // pred_region
          _
        $region16: #{positioning_forward.1} parent=11 // pred_fallthru
          _
        // Predicated region
        $region17: #{positioning_forward.1} parent=11 // pred_check
          %p261 = pneg %p65
        $region18: #{positioning_forward.1} parent=11 // pred_check_branch
          %263 = sbr.rel (%p261) target = $region20
        $region19: #{positioning_forward.1} parent=11 // pred_region
          _
        $region20: #{positioning_forward.1} parent=11 // pred_fallthru
          _
        // Predicated region
        $region21: #{positioning_forward.1} parent=11 // pred_check
          %p264 = pneg %p112
        $region22: #{positioning_forward.1} parent=11 // pred_check_branch
          %266 = sbr.rel (%p264) target = $region24
        $region23: #{positioning_forward.1} parent=11 // pred_region
          _
        $region24: #{positioning_forward.1} parent=11 // pred_fallthru
          _
        // Predicated region
        $region25: #{positioning_forward.1} parent=11 // pred_check
          %p267 = pneg %p133
        $region26: #{positioning_forward.1} parent=11 // pred_check_branch
          %269 = sbr.rel (%p267) target = $region28
        $region27: #{positioning_forward.1} parent=11 // pred_region
          _
        $region28: #{positioning_forward.1} parent=11 // pred_fallthru
          _
        // Predicated region
        $region29: #{positioning_forward.1} parent=11 // pred_check
          %p270 = pneg %p154
        $region30: #{positioning_forward.1} parent=11 // pred_check_branch
          %272 = sbr.rel (%p270) target = $region32
        $region31: #{positioning_forward.1} parent=11 // pred_region
          _
        $region32: #{positioning_forward.1} parent=11 // pred_fallthru
          _
        // Predicated region
        $region33: #{positioning_forward.1} parent=11 // pred_check
          %p273 = pneg %p175
        $region34: #{positioning_forward.1} parent=11 // pred_check_branch
          %275 = sbr.rel (%p273) target = $region36
        $region35: #{positioning_forward.1} parent=11 // pred_region
          _
        $region36: #{positioning_forward.1} parent=11 // pred_fallthru
          _
        // Predicated region
        $region37: #{positioning_forward.1} parent=11 // pred_check
          %p276 = pneg %p196
        $region38: #{positioning_forward.1} parent=11 // pred_check_branch
          %278 = sbr.rel (%p276) target = $region40
        $region39: #{positioning_forward.1} parent=11 // pred_region
          _
        $region40: #{positioning_forward.1} parent=11 // pred_fallthru
          _
        // Predicated region
        $region41: #{positioning_forward.1} parent=11 // pred_check
          %p279 = pneg %p217
        $region42: #{positioning_forward.1} parent=11 // pred_check_branch
          %281 = sbr.rel (%p279) target = $region44
        $region43: #{positioning_forward.1} parent=11 // pred_region
          _
        $region44: #{positioning_forward.1} parent=11 // pred_fallthru
          _
      $region12: #{positioning_forward.1} parent=5 // pred_fallthru
        _
      %p282 = scmp.lt.s32.totalorder %s23, 2
      // Predicated region
      $region45: #{positioning_forward.1} parent=5 // pred_check
        %p283 = pneg %p282
      $region46: #{positioning_forward.1} parent=5 // pred_check_branch
        %285 = sbr.rel (%p283) target = $region48
      $region47: #{positioning_forward.1} parent=5 // pred_region
        // Predicated region
        $region49: #{positioning_forward.1} parent=47 // pred_check
          %p286 = pneg %p85
        $region50: #{positioning_forward.1} parent=47 // pred_check_branch
          %288 = sbr.rel (%p286) target = $region52
        $region51: #{positioning_forward.1} parent=47 // pred_region
          %s289 = sand.u32 %s75, 1
          %s290 = scalar_lea.sflag [#allocation5], %s289
          %s291 = sand.u32 %s75, 1
          %s292 = smul.addr %s291, 256
          %s293 = scalar_lea.vmem [#allocation4], %s292
          %295 = vsyncadd %s290, 0
          %s296 = smul.addr %s23, 32
          %s297 = smul.addr %s296, 8
          %s298 = scalar_lea.hbm %s2, %s297
          %s299 = sshll.u32 %s298, 4
          %s300 = int_to_ptr.hbm [resolvable:$true] %s299
          %s301 = sshll.u32 %s293, 4
          %s302 = int_to_ptr.vmem [resolvable:$true] %s301
          %307 = dma.hbm_to_vmem [thread:$0]  %s300, 4096, %s302, %s290, 128, 128, 8
        $region52: #{positioning_forward.1} parent=47 // pred_fallthru
          _
      $region48: #{positioning_forward.1} parent=5 // pred_fallthru
        _
      %p308 = scmp.le.s32.totalorder 1, %s23
      %p309 = scmp.lt.s32.totalorder %s23, 3
      %p310 = pnand %p308, %p309
      %p311 = pneg %p310
      // Predicated region
      $region53: #{positioning_forward.1} parent=5 // pred_check
        _
      $region54: #{positioning_forward.1} parent=5 // pred_check_branch
        %313 = sbr.rel (%p310) target = $region56
      $region55: #{positioning_forward.1} parent=5 // pred_region
        %s314 = ssub.s32 %s23, 1
        %s315 = sand.u32 %s78, 1
        %s316 = scalar_lea.sflag [#allocation5], %s315
        %s317 = sand.u32 %s78, 1
        %s318 = smul.addr %s317, 256
        %s319 = scalar_lea.vmem [#allocation4], %s318
        // Predicated region
        $region57: #{positioning_forward.1} parent=55 // pred_check
          %p320 = pneg %p91
        $region58: #{positioning_forward.1} parent=55 // pred_check_branch
          %322 = sbr.rel (%p320) target = $region60
        $region59: #{positioning_forward.1} parent=55 // pred_region
          %324 = dma.done %s316, 4096
        $region60: #{positioning_forward.1} parent=55 // pred_fallthru
          _
        %p325 = pneg %p44
        %p326 = pneg %p41
        %p327 = pneg %p65
        %p328 = pneg %p62
        %s329 = sand.u32 %s78, 1
        %s330 = scalar_lea.sflag [#allocation5], %s329
        %s331 = sand.u32 %s78, 1
        %s332 = smul.addr %s331, 256
        %s333 = scalar_lea.vmem [#allocation4], %s332
        %p334 = pneg %p91
        %p335 = pneg %p88
        %p336 = pneg %p112
        %p337 = pneg %p109
        %p338 = pneg %p133
        %p339 = pneg %p130
        %p340 = pneg %p154
        %p341 = pneg %p151
        %p342 = pneg %p175
        %p343 = pneg %p172
        %p344 = pneg %p196
        %p345 = pneg %p193
        %p346 = pneg %p217
        %p347 = pneg %p214
        %p348 = pneg %p243
        %p349 = pneg %p240
        %s350 = sand.u32 %s230, 1
        %s351 = scalar_lea.sflag [#allocation6], %s350
        %s352 = sand.u32 %s230, 1
        %s353 = smul.addr %s352, 256
        %s354 = scalar_lea.vmem [#allocation7], %s353
        %v356 = vld [vmem:[%s319] sm:$0xff]
        %v357 = vld [vmem:[%s319 + $0x8] sm:$0xff]
        %v358 = vld [vmem:[%s319 + $0x10] sm:$0xff]
        %v359 = vld [vmem:[%s319 + $0x18] sm:$0xff]
        %v360 = vld [vmem:[%s319 + $0x20] sm:$0xff]
        %v361 = vld [vmem:[%s319 + $0x28] sm:$0xff]
        %v362 = vld [vmem:[%s319 + $0x30] sm:$0xff]
        %v363 = vld [vmem:[%s319 + $0x38] sm:$0xff]
        %v364 = vld [vmem:[%s319 + $0x40] sm:$0xff]
        %v365 = vld [vmem:[%s319 + $0x48] sm:$0xff]
        %v366 = vld [vmem:[%s319 + $0x50] sm:$0xff]
        %v367 = vld [vmem:[%s319 + $0x58] sm:$0xff]
        %v368 = vld [vmem:[%s319 + $0x60] sm:$0xff]
        %v369 = vld [vmem:[%s319 + $0x68] sm:$0xff]
        %v370 = vld [vmem:[%s319 + $0x70] sm:$0xff]
        %v371 = vld [vmem:[%s319 + $0x78] sm:$0xff]
        %v372 = vld [vmem:[%s319 + $0x80] sm:$0xff]
        %v373 = vld [vmem:[%s319 + $0x88] sm:$0xff]
        %v374 = vld [vmem:[%s319 + $0x90] sm:$0xff]
        %v375 = vld [vmem:[%s319 + $0x98] sm:$0xff]
        %v376 = vld [vmem:[%s319 + $0xa0] sm:$0xff]
        %v377 = vld [vmem:[%s319 + $0xa8] sm:$0xff]
        %v378 = vld [vmem:[%s319 + $0xb0] sm:$0xff]
        %v379 = vld [vmem:[%s319 + $0xb8] sm:$0xff]
        %v380 = vld [vmem:[%s319 + $0xc0] sm:$0xff]
        %v381 = vld [vmem:[%s319 + $0xc8] sm:$0xff]
        %v382 = vld [vmem:[%s319 + $0xd0] sm:$0xff]
        %v383 = vld [vmem:[%s319 + $0xd8] sm:$0xff]
        %v384 = vld [vmem:[%s319 + $0xe0] sm:$0xff]
        %v385 = vld [vmem:[%s319 + $0xe8] sm:$0xff]
        %v386 = vld [vmem:[%s319 + $0xf0] sm:$0xff]
        %v387 = vld [vmem:[%s319 + $0xf8] sm:$0xff]
        %v388 = vpack.c.bf16 %v357, %v356
        %v389 = vpack.c.bf16 %v359, %v358
        %v390 = vpack.c.bf16 %v361, %v360
        %v391 = vpack.c.bf16 %v363, %v362
        %v392 = vpack.c.bf16 %v365, %v364
        %v393 = vpack.c.bf16 %v367, %v366
        %v394 = vpack.c.bf16 %v369, %v368
        %v395 = vpack.c.bf16 %v371, %v370
        %v396 = vpack.c.bf16 %v373, %v372
        %v397 = vpack.c.bf16 %v375, %v374
        %v398 = vpack.c.bf16 %v377, %v376
        %v399 = vpack.c.bf16 %v379, %v378
        %v400 = vpack.c.bf16 %v381, %v380
        %v401 = vpack.c.bf16 %v383, %v382
        %v402 = vpack.c.bf16 %v385, %v384
        %v403 = vpack.c.bf16 %v387, %v386
        %404 = vxpose.xlu0.c.b16.start [1/8] %v388, 128
        %405 = vxpose.xlu0.c.b16.cont [2/8] %v389, 128
        %406 = vxpose.xlu0.c.b16.cont [3/8] %v390, 128
        %407 = vxpose.xlu0.c.b16.cont [4/8] %v391, 128
        %408 = vxpose.xlu0.c.b16.cont [5/8] %v392, 128
        %409 = vxpose.xlu0.c.b16.cont [6/8] %v393, 128
        %410 = vxpose.xlu0.c.b16.cont [7/8] %v394, 128
        %411 = vxpose.xlu0.c.b16.end [8/8] %v395, 128
        %v412 = vpop.trf.xlu0
        %v413 = vpop.trf.xlu0
        %v414 = vpop.trf.xlu0
        %v415 = vpop.trf.xlu0
        %v416 = vpop.trf.xlu0
        %v417 = vpop.trf.xlu0
        %v418 = vpop.trf.xlu0
        %v419 = vpop.trf.xlu0
        %420 = vxpose.xlu0.c.b16.start [1/8] %v396, 128
        %421 = vxpose.xlu0.c.b16.cont [2/8] %v397, 128
        %422 = vxpose.xlu0.c.b16.cont [3/8] %v398, 128
        %423 = vxpose.xlu0.c.b16.cont [4/8] %v399, 128
        %424 = vxpose.xlu0.c.b16.cont [5/8] %v400, 128
        %425 = vxpose.xlu0.c.b16.cont [6/8] %v401, 128
        %426 = vxpose.xlu0.c.b16.cont [7/8] %v402, 128
        %427 = vxpose.xlu0.c.b16.end [8/8] %v403, 128
        %v428 = vpop.trf.xlu0
        %v429 = vpop.trf.xlu0
        %v430 = vpop.trf.xlu0
        %v431 = vpop.trf.xlu0
        %v432 = vpop.trf.xlu0
        %v433 = vpop.trf.xlu0
        %v434 = vpop.trf.xlu0
        %v435 = vpop.trf.xlu0
        %436 = vmatpush.bf16.msra.mxu0 %v395
        %437 = vmatpush.bf16.msra.mxu0 %v394
        %438 = vmatpush.bf16.msra.mxu0 %v393
        %439 = vmatpush.bf16.msra.mxu0 %v392
        %440 = vmatpush.bf16.msra.mxu0 %v391
        %441 = vmatpush.bf16.msra.mxu0 %v390
        %442 = vmatpush.bf16.msra.mxu0 %v389
        %443 = vmatpush.bf16.msra.mxu0 %v388
        %444 = vmatmul.bf16.gmra.mxu0 %v412
        %v445 = vpop.f32.mrf.mxu0
        %v446 = vadd.f32 0.0, %v445
        %v447 = vpop.f32.mrf.mxu0
        %v448 = vadd.f32 0.0, %v447
        %449 = vmatmul.bf16.gmra.mxu0 %v413
        %v450 = vpop.f32.mrf.mxu0
        %v451 = vadd.f32 0.0, %v450
        %v452 = vpop.f32.mrf.mxu0
        %v453 = vadd.f32 0.0, %v452
        %454 = vmatmul.bf16.gmra.mxu0 %v414
        %v455 = vpop.f32.mrf.mxu0
        %v456 = vadd.f32 0.0, %v455
        %v457 = vpop.f32.mrf.mxu0
        %v458 = vadd.f32 0.0, %v457
        %459 = vmatmul.bf16.gmra.mxu0 %v415
        %v460 = vpop.f32.mrf.mxu0
        %v461 = vadd.f32 0.0, %v460
        %v462 = vpop.f32.mrf.mxu0
        %v463 = vadd.f32 0.0, %v462
        %464 = vdwg.mxu0
        %465 = vmatpush.bf16.msra.mxu0 %v403
        %466 = vmatpush.bf16.msra.mxu0 %v402
        %467 = vmatpush.bf16.msra.mxu0 %v401
        %468 = vmatpush.bf16.msra.mxu0 %v400
        %469 = vmatpush.bf16.msra.mxu0 %v399
        %470 = vmatpush.bf16.msra.mxu0 %v398
        %471 = vmatpush.bf16.msra.mxu0 %v397
        %472 = vmatpush.bf16.msra.mxu0 %v396
        %473 = vmatmul.bf16.gmra.mxu0 %v428
        %v474 = vpop.f32.mrf.mxu0
        %v475 = vadd.f32 %v446, %v474
        %v476 = vpop.f32.mrf.mxu0
        %v477 = vadd.f32 %v448, %v476
        %478 = vmatmul.bf16.gmra.mxu0 %v429
        %v479 = vpop.f32.mrf.mxu0
        %v480 = vadd.f32 %v451, %v479
        %v481 = vpop.f32.mrf.mxu0
        %v482 = vadd.f32 %v453, %v481
        %483 = vmatmul.bf16.gmra.mxu0 %v430
        %v484 = vpop.f32.mrf.mxu0
        %v485 = vadd.f32 %v456, %v484
        %v486 = vpop.f32.mrf.mxu0
        %v487 = vadd.f32 %v458, %v486
        %488 = vmatmul.bf16.gmra.mxu0 %v431
        %v489 = vpop.f32.mrf.mxu0
        %v490 = vadd.f32 %v461, %v489
        %v491 = vpop.f32.mrf.mxu0
        %v492 = vadd.f32 %v463, %v491
        %493 = vdwg.mxu0
        %vm494 = vcmask 523264
        %v495 = vsel %vm494, %v475, -inf
        %496 = vmax.xlane.f32.xlu0 %v495
        %v497 = vpop.xlane.xlu0 %496
        %v498 = vsel %vm494, %v477, -inf
        %499 = vmax.xlane.f32.xlu0 %v498
        %v500 = vpop.xlane.xlu0 %499
        %v501 = vsel %vm494, %v480, -inf
        %502 = vmax.xlane.f32.xlu0 %v501
        %v503 = vpop.xlane.xlu0 %502
        %v504 = vsel %vm494, %v482, -inf
        %505 = vmax.xlane.f32.xlu0 %v504
        %v506 = vpop.xlane.xlu0 %505
        %v507 = vsel %vm494, %v485, -inf
        %508 = vmax.xlane.f32.xlu0 %v507
        %v509 = vpop.xlane.xlu0 %508
        %v510 = vsel %vm494, %v487, -inf
        %511 = vmax.xlane.f32.xlu0 %v510
        %v512 = vpop.xlane.xlu0 %511
        %v513 = vsel %vm494, %v490, -inf
        %514 = vmax.xlane.f32.xlu0 %v513
        %v515 = vpop.xlane.xlu0 %514
        %v516 = vsel %vm494, %v492, -inf
        %517 = vmax.xlane.f32.xlu0 %v516
        %v518 = vpop.xlane.xlu0 %517
        %v519 = vsub.f32 %v475, %v497
        %v520 = vsub.f32 %v477, %v500
        %v521 = vsub.f32 %v480, %v503
        %v522 = vsub.f32 %v482, %v506
        %v523 = vsub.f32 %v485, %v509
        %v524 = vsub.f32 %v487, %v512
        %v525 = vsub.f32 %v490, %v515
        %v526 = vsub.f32 %v492, %v518
        %v527 = vmul.f32 %v519, 1.442695
        %v528 = vpow.pop %v527
        %v529 = vmul.f32 %v520, 1.442695
        %v530 = vpow.pop %v529
        %v531 = vmul.f32 %v521, 1.442695
        %v532 = vpow.pop %v531
        %v533 = vmul.f32 %v522, 1.442695
        %v534 = vpow.pop %v533
        %v535 = vmul.f32 %v523, 1.442695
        %v536 = vpow.pop %v535
        %v537 = vmul.f32 %v524, 1.442695
        %v538 = vpow.pop %v537
        %v539 = vmul.f32 %v525, 1.442695
        %v540 = vpow.pop %v539
        %v541 = vmul.f32 %v526, 1.442695
        %v542 = vpow.pop %v541
        %v543 = vsel %vm494, %v528, 0.0
        %544 = vadd.xlane.f32.xlu0 %v543
        %v545 = vpop.xlane.xlu0 %544
        %v546 = vsel %vm494, %v530, 0.0
        %547 = vadd.xlane.f32.xlu0 %v546
        %v548 = vpop.xlane.xlu0 %547
        %v549 = vsel %vm494, %v532, 0.0
        %550 = vadd.xlane.f32.xlu0 %v549
        %v551 = vpop.xlane.xlu0 %550
        %v552 = vsel %vm494, %v534, 0.0
        %553 = vadd.xlane.f32.xlu0 %v552
        %v554 = vpop.xlane.xlu0 %553
        %v555 = vsel %vm494, %v536, 0.0
        %556 = vadd.xlane.f32.xlu0 %v555
        %v557 = vpop.xlane.xlu0 %556
        %v558 = vsel %vm494, %v538, 0.0
        %559 = vadd.xlane.f32.xlu0 %v558
        %v560 = vpop.xlane.xlu0 %559
        %v561 = vsel %vm494, %v540, 0.0
        %562 = vadd.xlane.f32.xlu0 %v561
        %v563 = vpop.xlane.xlu0 %562
        %v564 = vsel %vm494, %v542, 0.0
        %565 = vadd.xlane.f32.xlu0 %v564
        %v566 = vpop.xlane.xlu0 %565
        %v567 = vrcp.pop %v545
        %v568 = vmul.f32 %v545, %v567
        %v569 = vsub.f32 1.0, %v568
        %v570 = vmul.f32 %v567, %v569
        %v571 = vadd.f32 %v567, %v570
        %vm572 = vweird.f32 %v545
        %vm573 = vweird.f32 %v567
        %vm574 = vmor %vm572, %vm573
        %v575 = vsel %vm574, %v567, %v571
        %v576 = vand.u32 2147483647, %v545
        %vm577 = vcmp.eq.f32.partialorder %v576, 8.507059e+37
        %v578 = vand.u32 %v545, 2147483648
        %v579 = vor.u32 1.1754944e-38, %v578
        %v580 = vsel %vm577, %v579, %v575
        %v581 = vmul.f32 %v528, %v580
        %v582 = vrcp.pop %v548
        %v583 = vmul.f32 %v548, %v582
        %v584 = vsub.f32 1.0, %v583
        %v585 = vmul.f32 %v582, %v584
        %v586 = vadd.f32 %v582, %v585
        %vm587 = vweird.f32 %v548
        %vm588 = vweird.f32 %v582
        %vm589 = vmor %vm587, %vm588
        %v590 = vsel %vm589, %v582, %v586
        %v591 = vand.u32 2147483647, %v548
        %vm592 = vcmp.eq.f32.partialorder %v591, 8.507059e+37
        %v593 = vand.u32 %v548, 2147483648
        %v594 = vor.u32 1.1754944e-38, %v593
        %v595 = vsel %vm592, %v594, %v590
        %v596 = vmul.f32 %v530, %v595
        %v597 = vrcp.pop %v551
        %v598 = vmul.f32 %v551, %v597
        %v599 = vsub.f32 1.0, %v598
        %v600 = vmul.f32 %v597, %v599
        %v601 = vadd.f32 %v597, %v600
        %vm602 = vweird.f32 %v551
        %vm603 = vweird.f32 %v597
        %vm604 = vmor %vm602, %vm603
        %v605 = vsel %vm604, %v597, %v601
        %v606 = vand.u32 2147483647, %v551
        %vm607 = vcmp.eq.f32.partialorder %v606, 8.507059e+37
        %v608 = vand.u32 %v551, 2147483648
        %v609 = vor.u32 1.1754944e-38, %v608
        %v610 = vsel %vm607, %v609, %v605
        %v611 = vmul.f32 %v532, %v610
        %v612 = vrcp.pop %v554
        %v613 = vmul.f32 %v554, %v612
        %v614 = vsub.f32 1.0, %v613
        %v615 = vmul.f32 %v612, %v614
        %v616 = vadd.f32 %v612, %v615
        %vm617 = vweird.f32 %v554
        %vm618 = vweird.f32 %v612
        %vm619 = vmor %vm617, %vm618
        %v620 = vsel %vm619, %v612, %v616
        %v621 = vand.u32 2147483647, %v554
        %vm622 = vcmp.eq.f32.partialorder %v621, 8.507059e+37
        %v623 = vand.u32 %v554, 2147483648
        %v624 = vor.u32 1.1754944e-38, %v623
        %v625 = vsel %vm622, %v624, %v620
        %v626 = vmul.f32 %v534, %v625
        %v627 = vrcp.pop %v557
        %v628 = vmul.f32 %v557, %v627
        %v629 = vsub.f32 1.0, %v628
        %v630 = vmul.f32 %v627, %v629
        %v631 = vadd.f32 %v627, %v630
        %vm632 = vweird.f32 %v557
        %vm633 = vweird.f32 %v627
        %vm634 = vmor %vm632, %vm633
        %v635 = vsel %vm634, %v627, %v631
        %v636 = vand.u32 2147483647, %v557
        %vm637 = vcmp.eq.f32.partialorder %v636, 8.507059e+37
        %v638 = vand.u32 %v557, 2147483648
        %v639 = vor.u32 1.1754944e-38, %v638
        %v640 = vsel %vm637, %v639, %v635
        %v641 = vmul.f32 %v536, %v640
        %v642 = vrcp.pop %v560
        %v643 = vmul.f32 %v560, %v642
        %v644 = vsub.f32 1.0, %v643
        %v645 = vmul.f32 %v642, %v644
        %v646 = vadd.f32 %v642, %v645
        %vm647 = vweird.f32 %v560
        %vm648 = vweird.f32 %v642
        %vm649 = vmor %vm647, %vm648
        %v650 = vsel %vm649, %v642, %v646
        %v651 = vand.u32 2147483647, %v560
        %vm652 = vcmp.eq.f32.partialorder %v651, 8.507059e+37
        %v653 = vand.u32 %v560, 2147483648
        %v654 = vor.u32 1.1754944e-38, %v653
        %v655 = vsel %vm652, %v654, %v650
        %v656 = vmul.f32 %v538, %v655
        %v657 = vrcp.pop %v563
        %v658 = vmul.f32 %v563, %v657
        %v659 = vsub.f32 1.0, %v658
        %v660 = vmul.f32 %v657, %v659
        %v661 = vadd.f32 %v657, %v660
        %vm662 = vweird.f32 %v563
        %vm663 = vweird.f32 %v657
        %vm664 = vmor %vm662, %vm663
        %v665 = vsel %vm664, %v657, %v661
        %v666 = vand.u32 2147483647, %v563
        %vm667 = vcmp.eq.f32.partialorder %v666, 8.507059e+37
        %v668 = vand.u32 %v563, 2147483648
        %v669 = vor.u32 1.1754944e-38, %v668
        %v670 = vsel %vm667, %v669, %v665
        %v671 = vmul.f32 %v540, %v670
        %v672 = vrcp.pop %v566
        %v673 = vmul.f32 %v566, %v672
        %v674 = vsub.f32 1.0, %v673
        %v675 = vmul.f32 %v672, %v674
        %v676 = vadd.f32 %v672, %v675
        %vm677 = vweird.f32 %v566
        %vm678 = vweird.f32 %v672
        %vm679 = vmor %vm677, %vm678
        %v680 = vsel %vm679, %v672, %v676
        %v681 = vand.u32 2147483647, %v566
        %vm682 = vcmp.eq.f32.partialorder %v681, 8.507059e+37
        %v683 = vand.u32 %v566, 2147483648
        %v684 = vor.u32 1.1754944e-38, %v683
        %v685 = vsel %vm682, %v684, %v680
        %v686 = vmul.f32 %v542, %v685
        %v687 = vpack.c.bf16 %v596, %v581
        %v688 = vpack.c.bf16 %v626, %v611
        %v689 = vpack.c.bf16 %v656, %v641
        %v690 = vpack.c.bf16 %v686, %v671
        %v692 = vsel %vm494, %v388, 0
        %v695 = vsel %vm494, %v389, 0
        %v698 = vsel %vm494, %v390, 0
        %v701 = vsel %vm494, %v391, 0
        %v704 = vsel %vm494, %v392, 0
        %v707 = vsel %vm494, %v393, 0
        %v710 = vsel %vm494, %v394, 0
        %v713 = vsel %vm494, %v395, 0
        %v716 = vsel %vm494, %v396, 0
        %v719 = vsel %vm494, %v397, 0
        %v722 = vsel %vm494, %v398, 0
        %v725 = vsel %vm494, %v399, 0
        %v728 = vsel %vm494, %v400, 0
        %v731 = vsel %vm494, %v401, 0
        %v734 = vsel %vm494, %v402, 0
        %v737 = vsel %vm494, %v403, 0
        %v740 = vsel %vm494, %v687, 0
        %v743 = vsel %vm494, %v688, 0
        %v746 = vsel %vm494, %v689, 0
        %v749 = vsel %vm494, %v690, 0
        %751 = vmatpush.bf16.xpose.msra.mxu0 0
        %752 = vmatpush.bf16.xpose.msra.mxu0 0
        %753 = vmatpush.bf16.xpose.msra.mxu0 0
        %754 = vmatpush.bf16.xpose.msra.mxu0 0
        %755 = vmatpush.bf16.xpose.msra.mxu0 %v749
        %756 = vmatpush.bf16.xpose.msra.mxu0 %v746
        %757 = vmatpush.bf16.xpose.msra.mxu0 %v743
        %758 = vmatpush.bf16.xpose.msra.mxu0 %v740
        %759 = vmatmul.bf16.gmra.mxu0 %v692
        %v760 = vpop.f32.mrf.mxu0
        %v761 = vadd.f32 0.0, %v760
        %v762 = vpop.f32.mrf.mxu0
        %v763 = vadd.f32 0.0, %v762
        %764 = vmatmul.bf16.gmra.mxu0 %v695
        %v765 = vpop.f32.mrf.mxu0
        %v766 = vadd.f32 0.0, %v765
        %v767 = vpop.f32.mrf.mxu0
        %v768 = vadd.f32 0.0, %v767
        %769 = vmatmul.bf16.gmra.mxu0 %v698
        %v770 = vpop.f32.mrf.mxu0
        %v771 = vadd.f32 0.0, %v770
        %v772 = vpop.f32.mrf.mxu0
        %v773 = vadd.f32 0.0, %v772
        %774 = vmatmul.bf16.gmra.mxu0 %v701
        %v775 = vpop.f32.mrf.mxu0
        %v776 = vadd.f32 0.0, %v775
        %v777 = vpop.f32.mrf.mxu0
        %v778 = vadd.f32 0.0, %v777
        %779 = vmatmul.bf16.gmra.mxu0 %v704
        %v780 = vpop.f32.mrf.mxu0
        %v781 = vadd.f32 0.0, %v780
        %v782 = vpop.f32.mrf.mxu0
        %v783 = vadd.f32 0.0, %v782
        %784 = vmatmul.bf16.gmra.mxu0 %v707
        %v785 = vpop.f32.mrf.mxu0
        %v786 = vadd.f32 0.0, %v785
        %v787 = vpop.f32.mrf.mxu0
        %v788 = vadd.f32 0.0, %v787
        %789 = vmatmul.bf16.gmra.mxu0 %v710
        %v790 = vpop.f32.mrf.mxu0
        %v791 = vadd.f32 0.0, %v790
        %v792 = vpop.f32.mrf.mxu0
        %v793 = vadd.f32 0.0, %v792
        %794 = vmatmul.bf16.gmra.mxu0 %v713
        %v795 = vpop.f32.mrf.mxu0
        %v796 = vadd.f32 0.0, %v795
        %v797 = vpop.f32.mrf.mxu0
        %v798 = vadd.f32 0.0, %v797
        %799 = vmatmul.bf16.gmra.mxu0 %v716
        %v800 = vpop.f32.mrf.mxu0
        %v801 = vadd.f32 0.0, %v800
        %v802 = vpop.f32.mrf.mxu0
        %v803 = vadd.f32 0.0, %v802
        %804 = vmatmul.bf16.gmra.mxu0 %v719
        %v805 = vpop.f32.mrf.mxu0
        %v806 = vadd.f32 0.0, %v805
        %v807 = vpop.f32.mrf.mxu0
        %v808 = vadd.f32 0.0, %v807
        %809 = vmatmul.bf16.gmra.mxu0 %v722
        %v810 = vpop.f32.mrf.mxu0
        %v811 = vadd.f32 0.0, %v810
        %v812 = vpop.f32.mrf.mxu0
        %v813 = vadd.f32 0.0, %v812
        %814 = vmatmul.bf16.gmra.mxu0 %v725
        %v815 = vpop.f32.mrf.mxu0
        %v816 = vadd.f32 0.0, %v815
        %v817 = vpop.f32.mrf.mxu0
        %v818 = vadd.f32 0.0, %v817
        %819 = vmatmul.bf16.gmra.mxu0 %v728
        %v820 = vpop.f32.mrf.mxu0
        %v821 = vadd.f32 0.0, %v820
        %v822 = vpop.f32.mrf.mxu0
        %v823 = vadd.f32 0.0, %v822
        %824 = vmatmul.bf16.gmra.mxu0 %v731
        %v825 = vpop.f32.mrf.mxu0
        %v826 = vadd.f32 0.0, %v825
        %v827 = vpop.f32.mrf.mxu0
        %v828 = vadd.f32 0.0, %v827
        %829 = vmatmul.bf16.gmra.mxu0 %v734
        %v830 = vpop.f32.mrf.mxu0
        %v831 = vadd.f32 0.0, %v830
        %v832 = vpop.f32.mrf.mxu0
        %v833 = vadd.f32 0.0, %v832
        %834 = vmatmul.bf16.gmra.mxu0 %v737
        %v835 = vpop.f32.mrf.mxu0
        %v836 = vadd.f32 0.0, %v835
        %v837 = vpop.f32.mrf.mxu0
        %v838 = vadd.f32 0.0, %v837
        %839 = vdwg.mxu0
        %s840 = sld [smem:[#allocation2]]
        %v841 = vstv %s840
        %v842 = vmul.f32 %v841, %v761
        %v843 = vmul.f32 %v841, %v763
        %v844 = vmul.f32 %v841, %v766
        %v845 = vmul.f32 %v841, %v768
        %v846 = vmul.f32 %v841, %v771
        %v847 = vmul.f32 %v841, %v773
        %v848 = vmul.f32 %v841, %v776
        %v849 = vmul.f32 %v841, %v778
        %v850 = vmul.f32 %v841, %v781
        %v851 = vmul.f32 %v841, %v783
        %v852 = vmul.f32 %v841, %v786
        %v853 = vmul.f32 %v841, %v788
        %v854 = vmul.f32 %v841, %v791
        %v855 = vmul.f32 %v841, %v793
        %v856 = vmul.f32 %v841, %v796
        %v857 = vmul.f32 %v841, %v798
        %v858 = vmul.f32 %v841, %v801
        %v859 = vmul.f32 %v841, %v803
        %v860 = vmul.f32 %v841, %v806
        %v861 = vmul.f32 %v841, %v808
        %v862 = vmul.f32 %v841, %v811
        %v863 = vmul.f32 %v841, %v813
        %v864 = vmul.f32 %v841, %v816
        %v865 = vmul.f32 %v841, %v818
        %v866 = vmul.f32 %v841, %v821
        %v867 = vmul.f32 %v841, %v823
        %v868 = vmul.f32 %v841, %v826
        %v869 = vmul.f32 %v841, %v828
        %v870 = vmul.f32 %v841, %v831
        %v871 = vmul.f32 %v841, %v833
        %v872 = vmul.f32 %v841, %v836
        %v873 = vmul.f32 %v841, %v838
        %v874 = vadd.f32 %v842, %v356
        %v875 = vadd.f32 %v843, %v357
        %v876 = vadd.f32 %v844, %v358
        %v877 = vadd.f32 %v845, %v359
        %v878 = vadd.f32 %v846, %v360
        %v879 = vadd.f32 %v847, %v361
        %v880 = vadd.f32 %v848, %v362
        %v881 = vadd.f32 %v849, %v363
        %v882 = vadd.f32 %v850, %v364
        %v883 = vadd.f32 %v851, %v365
        %v884 = vadd.f32 %v852, %v366
        %v885 = vadd.f32 %v853, %v367
        %v886 = vadd.f32 %v854, %v368
        %v887 = vadd.f32 %v855, %v369
        %v888 = vadd.f32 %v856, %v370
        %v889 = vadd.f32 %v857, %v371
        %v890 = vadd.f32 %v858, %v372
        %v891 = vadd.f32 %v859, %v373
        %v892 = vadd.f32 %v860, %v374
        %v893 = vadd.f32 %v861, %v375
        %v894 = vadd.f32 %v862, %v376
        %v895 = vadd.f32 %v863, %v377
        %v896 = vadd.f32 %v864, %v378
        %v897 = vadd.f32 %v865, %v379
        %v898 = vadd.f32 %v866, %v380
        %v899 = vadd.f32 %v867, %v381
        %v900 = vadd.f32 %v868, %v382
        %v901 = vadd.f32 %v869, %v383
        %v902 = vadd.f32 %v870, %v384
        %v903 = vadd.f32 %v871, %v385
        %v904 = vadd.f32 %v872, %v386
        %v905 = vadd.f32 %v873, %v387
        %v906 = vpack.c.bf16 %v875, %v874
        %v907 = vpack.c.bf16 %v877, %v876
        %v908 = vpack.c.bf16 %v879, %v878
        %v909 = vpack.c.bf16 %v881, %v880
        %v910 = vpack.c.bf16 %v883, %v882
        %v911 = vpack.c.bf16 %v885, %v884
        %v912 = vpack.c.bf16 %v887, %v886
        %v913 = vpack.c.bf16 %v889, %v888
        %v914 = vpack.c.bf16 %v891, %v890
        %v915 = vpack.c.bf16 %v893, %v892
        %v916 = vpack.c.bf16 %v895, %v894
        %v917 = vpack.c.bf16 %v897, %v896
        %v918 = vpack.c.bf16 %v899, %v898
        %v919 = vpack.c.bf16 %v901, %v900
        %v920 = vpack.c.bf16 %v903, %v902
        %v921 = vpack.c.bf16 %v905, %v904
        %v922 = vld [vmem:[%s3] sm:$0xf]
        %v923 = vld [vmem:[%s3 + $0x4] sm:$0xf]
        %v924 = vld [vmem:[%s3 + $0x8] sm:$0xf]
        %v925 = vld [vmem:[%s3 + $0xc] sm:$0xf]
        %v926 = vld [vmem:[%s3 + $0x10] sm:$0xf]
        %v927 = vld [vmem:[%s3 + $0x14] sm:$0xf]
        %v928 = vld [vmem:[%s3 + $0x18] sm:$0xf]
        %v929 = vld [vmem:[%s3 + $0x1c] sm:$0xf]
        %v930 = vld [vmem:[%s4] sm:$0x1]
        %v932 = vperm.slane %v930, 0
        %v942 = vunpack.c.l.b16 %v922
        %v943 = vunpack.c.l.b16 %v923
        %v944 = vunpack.c.l.b16 %v924
        %v945 = vunpack.c.l.b16 %v925
        %v946 = vunpack.c.l.b16 %v926
        %v947 = vunpack.c.l.b16 %v927
        %v948 = vunpack.c.l.b16 %v928
        %v949 = vunpack.c.l.b16 %v929
        %v950 = vpack.c.b16 %v943, %v942
        %v951 = vpack.c.b16 %v945, %v944
        %v952 = vpack.c.b16 %v947, %v946
        %v953 = vpack.c.b16 %v949, %v948
        %v959 = vsel %vm494, %v906, 0
        %v962 = vsel %vm494, %v907, 0
        %v965 = vsel %vm494, %v908, 0
        %v968 = vsel %vm494, %v909, 0
        %v971 = vsel %vm494, %v910, 0
        %v974 = vsel %vm494, %v911, 0
        %v977 = vsel %vm494, %v912, 0
        %v980 = vsel %vm494, %v913, 0
        %v983 = vsel %vm494, %v914, 0
        %v986 = vsel %vm494, %v915, 0
        %v989 = vsel %vm494, %v916, 0
        %v992 = vsel %vm494, %v917, 0
        %v995 = vsel %vm494, %v918, 0
        %v998 = vsel %vm494, %v919, 0
        %v1001 = vsel %vm494, %v920, 0
        %v1004 = vsel %vm494, %v921, 0
        %1006 = vmatpush.bf16.msra.mxu0 0
        %1007 = vmatpush.bf16.msra.mxu0 0
        %1008 = vmatpush.bf16.msra.mxu0 0
        %1009 = vmatpush.bf16.msra.mxu0 0
        %1010 = vmatpush.bf16.msra.mxu0 %v953
        %1011 = vmatpush.bf16.msra.mxu0 %v952
        %1012 = vmatpush.bf16.msra.mxu0 %v951
        %1013 = vmatpush.bf16.msra.mxu0 %v950
        %1014 = vmatmul.bf16.gmra.mxu0 %v959
        %v1015 = vpop.f32.mrf.mxu0
        %v1016 = vadd.f32 %v932, %v1015
        %v1017 = vpop.f32.mrf.mxu0
        %v1018 = vadd.f32 %v932, %v1017
        %1019 = vmatmul.bf16.gmra.mxu0 %v962
        %v1020 = vpop.f32.mrf.mxu0
        %v1021 = vadd.f32 %v932, %v1020
        %v1022 = vpop.f32.mrf.mxu0
        %v1023 = vadd.f32 %v932, %v1022
        %1024 = vmatmul.bf16.gmra.mxu0 %v965
        %v1025 = vpop.f32.mrf.mxu0
        %v1026 = vadd.f32 %v932, %v1025
        %v1027 = vpop.f32.mrf.mxu0
        %v1028 = vadd.f32 %v932, %v1027
        %1029 = vmatmul.bf16.gmra.mxu0 %v968
        %v1030 = vpop.f32.mrf.mxu0
        %v1031 = vadd.f32 %v932, %v1030
        %v1032 = vpop.f32.mrf.mxu0
        %v1033 = vadd.f32 %v932, %v1032
        %1034 = vmatmul.bf16.gmra.mxu0 %v971
        %v1035 = vpop.f32.mrf.mxu0
        %v1036 = vadd.f32 %v932, %v1035
        %v1037 = vpop.f32.mrf.mxu0
        %v1038 = vadd.f32 %v932, %v1037
        %1039 = vmatmul.bf16.gmra.mxu0 %v974
        %v1040 = vpop.f32.mrf.mxu0
        %v1041 = vadd.f32 %v932, %v1040
        %v1042 = vpop.f32.mrf.mxu0
        %v1043 = vadd.f32 %v932, %v1042
        %1044 = vmatmul.bf16.gmra.mxu0 %v977
        %v1045 = vpop.f32.mrf.mxu0
        %v1046 = vadd.f32 %v932, %v1045
        %v1047 = vpop.f32.mrf.mxu0
        %v1048 = vadd.f32 %v932, %v1047
        %1049 = vmatmul.bf16.gmra.mxu0 %v980
        %v1050 = vpop.f32.mrf.mxu0
        %v1051 = vadd.f32 %v932, %v1050
        %v1052 = vpop.f32.mrf.mxu0
        %v1053 = vadd.f32 %v932, %v1052
        %1054 = vmatmul.bf16.gmra.mxu0 %v983
        %v1055 = vpop.f32.mrf.mxu0
        %v1056 = vadd.f32 %v932, %v1055
        %v1057 = vpop.f32.mrf.mxu0
        %v1058 = vadd.f32 %v932, %v1057
        %1059 = vmatmul.bf16.gmra.mxu0 %v986
        %v1060 = vpop.f32.mrf.mxu0
        %v1061 = vadd.f32 %v932, %v1060
        %v1062 = vpop.f32.mrf.mxu0
        %v1063 = vadd.f32 %v932, %v1062
        %1064 = vmatmul.bf16.gmra.mxu0 %v989
        %v1065 = vpop.f32.mrf.mxu0
        %v1066 = vadd.f32 %v932, %v1065
        %v1067 = vpop.f32.mrf.mxu0
        %v1068 = vadd.f32 %v932, %v1067
        %1069 = vmatmul.bf16.gmra.mxu0 %v992
        %v1070 = vpop.f32.mrf.mxu0
        %v1071 = vadd.f32 %v932, %v1070
        %v1072 = vpop.f32.mrf.mxu0
        %v1073 = vadd.f32 %v932, %v1072
        %1074 = vmatmul.bf16.gmra.mxu0 %v995
        %v1075 = vpop.f32.mrf.mxu0
        %v1076 = vadd.f32 %v932, %v1075
        %v1077 = vpop.f32.mrf.mxu0
        %v1078 = vadd.f32 %v932, %v1077
        %1079 = vmatmul.bf16.gmra.mxu0 %v998
        %v1080 = vpop.f32.mrf.mxu0
        %v1081 = vadd.f32 %v932, %v1080
        %v1082 = vpop.f32.mrf.mxu0
        %v1083 = vadd.f32 %v932, %v1082
        %1084 = vmatmul.bf16.gmra.mxu0 %v1001
        %v1085 = vpop.f32.mrf.mxu0
        %v1086 = vadd.f32 %v932, %v1085
        %v1087 = vpop.f32.mrf.mxu0
        %v1088 = vadd.f32 %v932, %v1087
        %1089 = vmatmul.bf16.gmra.mxu0 %v1004
        %v1090 = vpop.f32.mrf.mxu0
        %v1091 = vadd.f32 %v932, %v1090
        %v1092 = vpop.f32.mrf.mxu0
        %v1093 = vadd.f32 %v932, %v1092
        %1094 = vdwg.mxu0
        %v1095 = vpack.c.bf16 %v1018, %v1016
        %v1096 = vpack.c.bf16 %v1023, %v1021
        %v1097 = vpack.c.bf16 %v1028, %v1026
        %v1098 = vpack.c.bf16 %v1033, %v1031
        %v1099 = vpack.c.bf16 %v1038, %v1036
        %v1100 = vpack.c.bf16 %v1043, %v1041
        %v1101 = vpack.c.bf16 %v1048, %v1046
        %v1102 = vpack.c.bf16 %v1053, %v1051
        %v1103 = vpack.c.bf16 %v1058, %v1056
        %v1104 = vpack.c.bf16 %v1063, %v1061
        %v1105 = vpack.c.bf16 %v1068, %v1066
        %v1106 = vpack.c.bf16 %v1073, %v1071
        %v1107 = vpack.c.bf16 %v1078, %v1076
        %v1108 = vpack.c.bf16 %v1083, %v1081
        %v1109 = vpack.c.bf16 %v1088, %v1086
        %v1110 = vpack.c.bf16 %v1093, %v1091
        %v1111 = vld [vmem:[%s5] sm:$0xf]
        %v1112 = vld [vmem:[%s5 + $0x4] sm:$0xf]
        %v1113 = vld [vmem:[%s5 + $0x8] sm:$0xf]
        %v1114 = vld [vmem:[%s5 + $0xc] sm:$0xf]
        %v1115 = vld [vmem:[%s5 + $0x10] sm:$0xf]
        %v1116 = vld [vmem:[%s5 + $0x14] sm:$0xf]
        %v1117 = vld [vmem:[%s5 + $0x18] sm:$0xf]
        %v1118 = vld [vmem:[%s5 + $0x1c] sm:$0xf]
        %v1119 = vld [vmem:[%s6] sm:$0x1]
        %v1121 = vperm.slane %v1119, 0
        %v1131 = vunpack.c.l.b16 %v1111
        %v1132 = vunpack.c.l.b16 %v1112
        %v1133 = vunpack.c.l.b16 %v1113
        %v1134 = vunpack.c.l.b16 %v1114
        %v1135 = vunpack.c.l.b16 %v1115
        %v1136 = vunpack.c.l.b16 %v1116
        %v1137 = vunpack.c.l.b16 %v1117
        %v1138 = vunpack.c.l.b16 %v1118
        %v1139 = vpack.c.b16 %v1132, %v1131
        %v1140 = vpack.c.b16 %v1134, %v1133
        %v1141 = vpack.c.b16 %v1136, %v1135
        %v1142 = vpack.c.b16 %v1138, %v1137
        %1147 = vmatpush.bf16.msra.mxu0 0
        %1148 = vmatpush.bf16.msra.mxu0 0
        %1149 = vmatpush.bf16.msra.mxu0 0
        %1150 = vmatpush.bf16.msra.mxu0 0
        %1151 = vmatpush.bf16.msra.mxu0 %v1142
        %1152 = vmatpush.bf16.msra.mxu0 %v1141
        %1153 = vmatpush.bf16.msra.mxu0 %v1140
        %1154 = vmatpush.bf16.msra.mxu0 %v1139
        %1155 = vmatmul.bf16.gmra.mxu0 %v959
        %v1156 = vpop.f32.mrf.mxu0
        %v1157 = vadd.f32 %v1121, %v1156
        %v1158 = vpop.f32.mrf.mxu0
        %v1159 = vadd.f32 %v1121, %v1158
        %1160 = vmatmul.bf16.gmra.mxu0 %v962
        %v1161 = vpop.f32.mrf.mxu0
        %v1162 = vadd.f32 %v1121, %v1161
        %v1163 = vpop.f32.mrf.mxu0
        %v1164 = vadd.f32 %v1121, %v1163
        %1165 = vmatmul.bf16.gmra.mxu0 %v965
        %v1166 = vpop.f32.mrf.mxu0
        %v1167 = vadd.f32 %v1121, %v1166
        %v1168 = vpop.f32.mrf.mxu0
        %v1169 = vadd.f32 %v1121, %v1168
        %1170 = vmatmul.bf16.gmra.mxu0 %v968
        %v1171 = vpop.f32.mrf.mxu0
        %v1172 = vadd.f32 %v1121, %v1171
        %v1173 = vpop.f32.mrf.mxu0
        %v1174 = vadd.f32 %v1121, %v1173
        %1175 = vmatmul.bf16.gmra.mxu0 %v971
        %v1176 = vpop.f32.mrf.mxu0
        %v1177 = vadd.f32 %v1121, %v1176
        %v1178 = vpop.f32.mrf.mxu0
        %v1179 = vadd.f32 %v1121, %v1178
        %1180 = vmatmul.bf16.gmra.mxu0 %v974
        %v1181 = vpop.f32.mrf.mxu0
        %v1182 = vadd.f32 %v1121, %v1181
        %v1183 = vpop.f32.mrf.mxu0
        %v1184 = vadd.f32 %v1121, %v1183
        %1185 = vmatmul.bf16.gmra.mxu0 %v977
        %v1186 = vpop.f32.mrf.mxu0
        %v1187 = vadd.f32 %v1121, %v1186
        %v1188 = vpop.f32.mrf.mxu0
        %v1189 = vadd.f32 %v1121, %v1188
        %1190 = vmatmul.bf16.gmra.mxu0 %v980
        %v1191 = vpop.f32.mrf.mxu0
        %v1192 = vadd.f32 %v1121, %v1191
        %v1193 = vpop.f32.mrf.mxu0
        %v1194 = vadd.f32 %v1121, %v1193
        %1195 = vmatmul.bf16.gmra.mxu0 %v983
        %v1196 = vpop.f32.mrf.mxu0
        %v1197 = vadd.f32 %v1121, %v1196
        %v1198 = vpop.f32.mrf.mxu0
        %v1199 = vadd.f32 %v1121, %v1198
        %1200 = vmatmul.bf16.gmra.mxu0 %v986
        %v1201 = vpop.f32.mrf.mxu0
        %v1202 = vadd.f32 %v1121, %v1201
        %v1203 = vpop.f32.mrf.mxu0
        %v1204 = vadd.f32 %v1121, %v1203
        %1205 = vmatmul.bf16.gmra.mxu0 %v989
        %v1206 = vpop.f32.mrf.mxu0
        %v1207 = vadd.f32 %v1121, %v1206
        %v1208 = vpop.f32.mrf.mxu0
        %v1209 = vadd.f32 %v1121, %v1208
        %1210 = vmatmul.bf16.gmra.mxu0 %v992
        %v1211 = vpop.f32.mrf.mxu0
        %v1212 = vadd.f32 %v1121, %v1211
        %v1213 = vpop.f32.mrf.mxu0
        %v1214 = vadd.f32 %v1121, %v1213
        %1215 = vmatmul.bf16.gmra.mxu0 %v995
        %v1216 = vpop.f32.mrf.mxu0
        %v1217 = vadd.f32 %v1121, %v1216
        %v1218 = vpop.f32.mrf.mxu0
        %v1219 = vadd.f32 %v1121, %v1218
        %1220 = vmatmul.bf16.gmra.mxu0 %v998
        %v1221 = vpop.f32.mrf.mxu0
        %v1222 = vadd.f32 %v1121, %v1221
        %v1223 = vpop.f32.mrf.mxu0
        %v1224 = vadd.f32 %v1121, %v1223
        %1225 = vmatmul.bf16.gmra.mxu0 %v1001
        %v1226 = vpop.f32.mrf.mxu0
        %v1227 = vadd.f32 %v1121, %v1226
        %v1228 = vpop.f32.mrf.mxu0
        %v1229 = vadd.f32 %v1121, %v1228
        %1230 = vmatmul.bf16.gmra.mxu0 %v1004
        %v1231 = vpop.f32.mrf.mxu0
        %v1232 = vadd.f32 %v1121, %v1231
        %v1233 = vpop.f32.mrf.mxu0
        %v1234 = vadd.f32 %v1121, %v1233
        %1235 = vdwg.mxu0
        %v1236 = vpack.c.bf16 %v1159, %v1157
        %v1237 = vpack.c.bf16 %v1164, %v1162
        %v1238 = vpack.c.bf16 %v1169, %v1167
        %v1239 = vpack.c.bf16 %v1174, %v1172
        %v1240 = vpack.c.bf16 %v1179, %v1177
        %v1241 = vpack.c.bf16 %v1184, %v1182
        %v1242 = vpack.c.bf16 %v1189, %v1187
        %v1243 = vpack.c.bf16 %v1194, %v1192
        %v1244 = vpack.c.bf16 %v1199, %v1197
        %v1245 = vpack.c.bf16 %v1204, %v1202
        %v1246 = vpack.c.bf16 %v1209, %v1207
        %v1247 = vpack.c.bf16 %v1214, %v1212
        %v1248 = vpack.c.bf16 %v1219, %v1217
        %v1249 = vpack.c.bf16 %v1224, %v1222
        %v1250 = vpack.c.bf16 %v1229, %v1227
        %v1251 = vpack.c.bf16 %v1234, %v1232
        %v1252 = vld [vmem:[%s7] sm:$0xf]
        %v1253 = vld [vmem:[%s7 + $0x4] sm:$0xf]
        %v1254 = vld [vmem:[%s7 + $0x8] sm:$0xf]
        %v1255 = vld [vmem:[%s7 + $0xc] sm:$0xf]
        %v1256 = vld [vmem:[%s7 + $0x10] sm:$0xf]
        %v1257 = vld [vmem:[%s7 + $0x14] sm:$0xf]
        %v1258 = vld [vmem:[%s7 + $0x18] sm:$0xf]
        %v1259 = vld [vmem:[%s7 + $0x1c] sm:$0xf]
        %v1260 = vld [vmem:[%s8] sm:$0x1]
        %v1262 = vperm.slane %v1260, 0
        %v1272 = vunpack.c.l.b16 %v1252
        %v1273 = vunpack.c.l.b16 %v1253
        %v1274 = vunpack.c.l.b16 %v1254
        %v1275 = vunpack.c.l.b16 %v1255
        %v1276 = vunpack.c.l.b16 %v1256
        %v1277 = vunpack.c.l.b16 %v1257
        %v1278 = vunpack.c.l.b16 %v1258
        %v1279 = vunpack.c.l.b16 %v1259
        %v1280 = vpack.c.b16 %v1273, %v1272
        %v1281 = vpack.c.b16 %v1275, %v1274
        %v1282 = vpack.c.b16 %v1277, %v1276
        %v1283 = vpack.c.b16 %v1279, %v1278
        %1288 = vmatpush.bf16.msra.mxu0 0
        %1289 = vmatpush.bf16.msra.mxu0 0
        %1290 = vmatpush.bf16.msra.mxu0 0
        %1291 = vmatpush.bf16.msra.mxu0 0
        %1292 = vmatpush.bf16.msra.mxu0 %v1283
        %1293 = vmatpush.bf16.msra.mxu0 %v1282
        %1294 = vmatpush.bf16.msra.mxu0 %v1281
        %1295 = vmatpush.bf16.msra.mxu0 %v1280
        %1296 = vmatmul.bf16.gmra.mxu0 %v959
        %v1297 = vpop.f32.mrf.mxu0
        %v1298 = vadd.f32 %v1262, %v1297
        %v1299 = vpop.f32.mrf.mxu0
        %v1300 = vadd.f32 %v1262, %v1299
        %1301 = vmatmul.bf16.gmra.mxu0 %v962
        %v1302 = vpop.f32.mrf.mxu0
        %v1303 = vadd.f32 %v1262, %v1302
        %v1304 = vpop.f32.mrf.mxu0
        %v1305 = vadd.f32 %v1262, %v1304
        %1306 = vmatmul.bf16.gmra.mxu0 %v965
        %v1307 = vpop.f32.mrf.mxu0
        %v1308 = vadd.f32 %v1262, %v1307
        %v1309 = vpop.f32.mrf.mxu0
        %v1310 = vadd.f32 %v1262, %v1309
        %1311 = vmatmul.bf16.gmra.mxu0 %v968
        %v1312 = vpop.f32.mrf.mxu0
        %v1313 = vadd.f32 %v1262, %v1312
        %v1314 = vpop.f32.mrf.mxu0
        %v1315 = vadd.f32 %v1262, %v1314
        %1316 = vmatmul.bf16.gmra.mxu0 %v971
        %v1317 = vpop.f32.mrf.mxu0
        %v1318 = vadd.f32 %v1262, %v1317
        %v1319 = vpop.f32.mrf.mxu0
        %v1320 = vadd.f32 %v1262, %v1319
        %1321 = vmatmul.bf16.gmra.mxu0 %v974
        %v1322 = vpop.f32.mrf.mxu0
        %v1323 = vadd.f32 %v1262, %v1322
        %v1324 = vpop.f32.mrf.mxu0
        %v1325 = vadd.f32 %v1262, %v1324
        %1326 = vmatmul.bf16.gmra.mxu0 %v977
        %v1327 = vpop.f32.mrf.mxu0
        %v1328 = vadd.f32 %v1262, %v1327
        %v1329 = vpop.f32.mrf.mxu0
        %v1330 = vadd.f32 %v1262, %v1329
        %1331 = vmatmul.bf16.gmra.mxu0 %v980
        %v1332 = vpop.f32.mrf.mxu0
        %v1333 = vadd.f32 %v1262, %v1332
        %v1334 = vpop.f32.mrf.mxu0
        %v1335 = vadd.f32 %v1262, %v1334
        %1336 = vmatmul.bf16.gmra.mxu0 %v983
        %v1337 = vpop.f32.mrf.mxu0
        %v1338 = vadd.f32 %v1262, %v1337
        %v1339 = vpop.f32.mrf.mxu0
        %v1340 = vadd.f32 %v1262, %v1339
        %1341 = vmatmul.bf16.gmra.mxu0 %v986
        %v1342 = vpop.f32.mrf.mxu0
        %v1343 = vadd.f32 %v1262, %v1342
        %v1344 = vpop.f32.mrf.mxu0
        %v1345 = vadd.f32 %v1262, %v1344
        %1346 = vmatmul.bf16.gmra.mxu0 %v989
        %v1347 = vpop.f32.mrf.mxu0
        %v1348 = vadd.f32 %v1262, %v1347
        %v1349 = vpop.f32.mrf.mxu0
        %v1350 = vadd.f32 %v1262, %v1349
        %1351 = vmatmul.bf16.gmra.mxu0 %v992
        %v1352 = vpop.f32.mrf.mxu0
        %v1353 = vadd.f32 %v1262, %v1352
        %v1354 = vpop.f32.mrf.mxu0
        %v1355 = vadd.f32 %v1262, %v1354
        %1356 = vmatmul.bf16.gmra.mxu0 %v995
        %v1357 = vpop.f32.mrf.mxu0
        %v1358 = vadd.f32 %v1262, %v1357
        %v1359 = vpop.f32.mrf.mxu0
        %v1360 = vadd.f32 %v1262, %v1359
        %1361 = vmatmul.bf16.gmra.mxu0 %v998
        %v1362 = vpop.f32.mrf.mxu0
        %v1363 = vadd.f32 %v1262, %v1362
        %v1364 = vpop.f32.mrf.mxu0
        %v1365 = vadd.f32 %v1262, %v1364
        %1366 = vmatmul.bf16.gmra.mxu0 %v1001
        %v1367 = vpop.f32.mrf.mxu0
        %v1368 = vadd.f32 %v1262, %v1367
        %v1369 = vpop.f32.mrf.mxu0
        %v1370 = vadd.f32 %v1262, %v1369
        %1371 = vmatmul.bf16.gmra.mxu0 %v1004
        %v1372 = vpop.f32.mrf.mxu0
        %v1373 = vadd.f32 %v1262, %v1372
        %v1374 = vpop.f32.mrf.mxu0
        %v1375 = vadd.f32 %v1262, %v1374
        %1376 = vdwg.mxu0
        %v1377 = vpack.c.bf16 %v1300, %v1298
        %v1378 = vpack.c.bf16 %v1305, %v1303
        %v1379 = vpack.c.bf16 %v1310, %v1308
        %v1380 = vpack.c.bf16 %v1315, %v1313
        %v1381 = vpack.c.bf16 %v1320, %v1318
        %v1382 = vpack.c.bf16 %v1325, %v1323
        %v1383 = vpack.c.bf16 %v1330, %v1328
        %v1384 = vpack.c.bf16 %v1335, %v1333
        %v1385 = vpack.c.bf16 %v1340, %v1338
        %v1386 = vpack.c.bf16 %v1345, %v1343
        %v1387 = vpack.c.bf16 %v1350, %v1348
        %v1388 = vpack.c.bf16 %v1355, %v1353
        %v1389 = vpack.c.bf16 %v1360, %v1358
        %v1390 = vpack.c.bf16 %v1365, %v1363
        %v1391 = vpack.c.bf16 %v1370, %v1368
        %v1392 = vpack.c.bf16 %v1375, %v1373
        %1393 = vmatpush.bf16.xpose.msra.mxu0 %v1243
        %1394 = vmatpush.bf16.xpose.msra.mxu0 %v1242
        %1395 = vmatpush.bf16.xpose.msra.mxu0 %v1241
        %1396 = vmatpush.bf16.xpose.msra.mxu0 %v1240
        %1397 = vmatpush.bf16.xpose.msra.mxu0 %v1239
        %1398 = vmatpush.bf16.xpose.msra.mxu0 %v1238
        %1399 = vmatpush.bf16.xpose.msra.mxu0 %v1237
        %1400 = vmatpush.bf16.xpose.msra.mxu0 %v1236
        %1401 = vmatmul.bf16.gmra.mxu0 %v1095
        %v1402 = vpop.f32.mrf.mxu0
        %v1403 = vadd.f32 0.0, %v1402
        %v1404 = vpop.f32.mrf.mxu0
        %v1405 = vadd.f32 0.0, %v1404
        %1406 = vmatmul.bf16.gmra.mxu0 %v1096
        %v1407 = vpop.f32.mrf.mxu0
        %v1408 = vadd.f32 0.0, %v1407
        %v1409 = vpop.f32.mrf.mxu0
        %v1410 = vadd.f32 0.0, %v1409
        %1411 = vmatmul.bf16.gmra.mxu0 %v1097
        %v1412 = vpop.f32.mrf.mxu0
        %v1413 = vadd.f32 0.0, %v1412
        %v1414 = vpop.f32.mrf.mxu0
        %v1415 = vadd.f32 0.0, %v1414
        %1416 = vmatmul.bf16.gmra.mxu0 %v1098
        %v1417 = vpop.f32.mrf.mxu0
        %v1418 = vadd.f32 0.0, %v1417
        %v1419 = vpop.f32.mrf.mxu0
        %v1420 = vadd.f32 0.0, %v1419
        %1421 = vmatmul.bf16.gmra.mxu0 %v1099
        %v1422 = vpop.f32.mrf.mxu0
        %v1423 = vadd.f32 0.0, %v1422
        %v1424 = vpop.f32.mrf.mxu0
        %v1425 = vadd.f32 0.0, %v1424
        %1426 = vmatmul.bf16.gmra.mxu0 %v1100
        %v1427 = vpop.f32.mrf.mxu0
        %v1428 = vadd.f32 0.0, %v1427
        %v1429 = vpop.f32.mrf.mxu0
        %v1430 = vadd.f32 0.0, %v1429
        %1431 = vmatmul.bf16.gmra.mxu0 %v1101
        %v1432 = vpop.f32.mrf.mxu0
        %v1433 = vadd.f32 0.0, %v1432
        %v1434 = vpop.f32.mrf.mxu0
        %v1435 = vadd.f32 0.0, %v1434
        %1436 = vmatmul.bf16.gmra.mxu0 %v1102
        %v1437 = vpop.f32.mrf.mxu0
        %v1438 = vadd.f32 0.0, %v1437
        %v1439 = vpop.f32.mrf.mxu0
        %v1440 = vadd.f32 0.0, %v1439
        %1441 = vmatmul.bf16.gmra.mxu0 %v1103
        %v1442 = vpop.f32.mrf.mxu0
        %v1443 = vadd.f32 0.0, %v1442
        %v1444 = vpop.f32.mrf.mxu0
        %v1445 = vadd.f32 0.0, %v1444
        %1446 = vmatmul.bf16.gmra.mxu0 %v1104
        %v1447 = vpop.f32.mrf.mxu0
        %v1448 = vadd.f32 0.0, %v1447
        %v1449 = vpop.f32.mrf.mxu0
        %v1450 = vadd.f32 0.0, %v1449
        %1451 = vmatmul.bf16.gmra.mxu0 %v1105
        %v1452 = vpop.f32.mrf.mxu0
        %v1453 = vadd.f32 0.0, %v1452
        %v1454 = vpop.f32.mrf.mxu0
        %v1455 = vadd.f32 0.0, %v1454
        %1456 = vmatmul.bf16.gmra.mxu0 %v1106
        %v1457 = vpop.f32.mrf.mxu0
        %v1458 = vadd.f32 0.0, %v1457
        %v1459 = vpop.f32.mrf.mxu0
        %v1460 = vadd.f32 0.0, %v1459
        %1461 = vmatmul.bf16.gmra.mxu0 %v1107
        %v1462 = vpop.f32.mrf.mxu0
        %v1463 = vadd.f32 0.0, %v1462
        %v1464 = vpop.f32.mrf.mxu0
        %v1465 = vadd.f32 0.0, %v1464
        %1466 = vmatmul.bf16.gmra.mxu0 %v1108
        %v1467 = vpop.f32.mrf.mxu0
        %v1468 = vadd.f32 0.0, %v1467
        %v1469 = vpop.f32.mrf.mxu0
        %v1470 = vadd.f32 0.0, %v1469
        %1471 = vmatmul.bf16.gmra.mxu0 %v1109
        %v1472 = vpop.f32.mrf.mxu0
        %v1473 = vadd.f32 0.0, %v1472
        %v1474 = vpop.f32.mrf.mxu0
        %v1475 = vadd.f32 0.0, %v1474
        %1476 = vmatmul.bf16.gmra.mxu0 %v1110
        %v1477 = vpop.f32.mrf.mxu0
        %v1478 = vadd.f32 0.0, %v1477
        %v1479 = vpop.f32.mrf.mxu0
        %v1480 = vadd.f32 0.0, %v1479
        %1481 = vdwg.mxu0
        %1482 = vmatpush.bf16.xpose.msra.mxu0 %v1251
        %1483 = vmatpush.bf16.xpose.msra.mxu0 %v1250
        %1484 = vmatpush.bf16.xpose.msra.mxu0 %v1249
        %1485 = vmatpush.bf16.xpose.msra.mxu0 %v1248
        %1486 = vmatpush.bf16.xpose.msra.mxu0 %v1247
        %1487 = vmatpush.bf16.xpose.msra.mxu0 %v1246
        %1488 = vmatpush.bf16.xpose.msra.mxu0 %v1245
        %1489 = vmatpush.bf16.xpose.msra.mxu0 %v1244
        %1490 = vmatmul.bf16.gmra.mxu0 %v1095
        %v1491 = vpop.f32.mrf.mxu0
        %v1492 = vadd.f32 0.0, %v1491
        %v1493 = vpop.f32.mrf.mxu0
        %v1494 = vadd.f32 0.0, %v1493
        %1495 = vmatmul.bf16.gmra.mxu0 %v1096
        %v1496 = vpop.f32.mrf.mxu0
        %v1497 = vadd.f32 0.0, %v1496
        %v1498 = vpop.f32.mrf.mxu0
        %v1499 = vadd.f32 0.0, %v1498
        %1500 = vmatmul.bf16.gmra.mxu0 %v1097
        %v1501 = vpop.f32.mrf.mxu0
        %v1502 = vadd.f32 0.0, %v1501
        %v1503 = vpop.f32.mrf.mxu0
        %v1504 = vadd.f32 0.0, %v1503
        %1505 = vmatmul.bf16.gmra.mxu0 %v1098
        %v1506 = vpop.f32.mrf.mxu0
        %v1507 = vadd.f32 0.0, %v1506
        %v1508 = vpop.f32.mrf.mxu0
        %v1509 = vadd.f32 0.0, %v1508
        %1510 = vmatmul.bf16.gmra.mxu0 %v1099
        %v1511 = vpop.f32.mrf.mxu0
        %v1512 = vadd.f32 0.0, %v1511
        %v1513 = vpop.f32.mrf.mxu0
        %v1514 = vadd.f32 0.0, %v1513
        %1515 = vmatmul.bf16.gmra.mxu0 %v1100
        %v1516 = vpop.f32.mrf.mxu0
        %v1517 = vadd.f32 0.0, %v1516
        %v1518 = vpop.f32.mrf.mxu0
        %v1519 = vadd.f32 0.0, %v1518
        %1520 = vmatmul.bf16.gmra.mxu0 %v1101
        %v1521 = vpop.f32.mrf.mxu0
        %v1522 = vadd.f32 0.0, %v1521
        %v1523 = vpop.f32.mrf.mxu0
        %v1524 = vadd.f32 0.0, %v1523
        %1525 = vmatmul.bf16.gmra.mxu0 %v1102
        %v1526 = vpop.f32.mrf.mxu0
        %v1527 = vadd.f32 0.0, %v1526
        %v1528 = vpop.f32.mrf.mxu0
        %v1529 = vadd.f32 0.0, %v1528
        %1530 = vmatmul.bf16.gmra.mxu0 %v1103
        %v1531 = vpop.f32.mrf.mxu0
        %v1532 = vadd.f32 0.0, %v1531
        %v1533 = vpop.f32.mrf.mxu0
        %v1534 = vadd.f32 0.0, %v1533
        %1535 = vmatmul.bf16.gmra.mxu0 %v1104
        %v1536 = vpop.f32.mrf.mxu0
        %v1537 = vadd.f32 0.0, %v1536
        %v1538 = vpop.f32.mrf.mxu0
        %v1539 = vadd.f32 0.0, %v1538
        %1540 = vmatmul.bf16.gmra.mxu0 %v1105
        %v1541 = vpop.f32.mrf.mxu0
        %v1542 = vadd.f32 0.0, %v1541
        %v1543 = vpop.f32.mrf.mxu0
        %v1544 = vadd.f32 0.0, %v1543
        %1545 = vmatmul.bf16.gmra.mxu0 %v1106
        %v1546 = vpop.f32.mrf.mxu0
        %v1547 = vadd.f32 0.0, %v1546
        %v1548 = vpop.f32.mrf.mxu0
        %v1549 = vadd.f32 0.0, %v1548
        %1550 = vmatmul.bf16.gmra.mxu0 %v1107
        %v1551 = vpop.f32.mrf.mxu0
        %v1552 = vadd.f32 0.0, %v1551
        %v1553 = vpop.f32.mrf.mxu0
        %v1554 = vadd.f32 0.0, %v1553
        %1555 = vmatmul.bf16.gmra.mxu0 %v1108
        %v1556 = vpop.f32.mrf.mxu0
        %v1557 = vadd.f32 0.0, %v1556
        %v1558 = vpop.f32.mrf.mxu0
        %v1559 = vadd.f32 0.0, %v1558
        %1560 = vmatmul.bf16.gmra.mxu0 %v1109
        %v1561 = vpop.f32.mrf.mxu0
        %v1562 = vadd.f32 0.0, %v1561
        %v1563 = vpop.f32.mrf.mxu0
        %v1564 = vadd.f32 0.0, %v1563
        %1565 = vmatmul.bf16.gmra.mxu0 %v1110
        %v1566 = vpop.f32.mrf.mxu0
        %v1567 = vadd.f32 0.0, %v1566
        %v1568 = vpop.f32.mrf.mxu0
        %v1569 = vadd.f32 0.0, %v1568
        %1570 = vdwg.mxu0
        %v1571 = vmax.f32 %v1403, %v1492
        %1572 = vmax.xlane.f32.xlu0 %v1571
        %v1573 = vpop.xlane.xlu0 %1572
        %v1574 = vmax.f32 %v1405, %v1494
        %1575 = vmax.xlane.f32.xlu0 %v1574
        %v1576 = vpop.xlane.xlu0 %1575
        %v1577 = vmax.f32 %v1408, %v1497
        %1578 = vmax.xlane.f32.xlu0 %v1577
        %v1579 = vpop.xlane.xlu0 %1578
        %v1580 = vmax.f32 %v1410, %v1499
        %1581 = vmax.xlane.f32.xlu0 %v1580
        %v1582 = vpop.xlane.xlu0 %1581
        %v1583 = vmax.f32 %v1413, %v1502
        %1584 = vmax.xlane.f32.xlu0 %v1583
        %v1585 = vpop.xlane.xlu0 %1584
        %v1586 = vmax.f32 %v1415, %v1504
        %1587 = vmax.xlane.f32.xlu0 %v1586
        %v1588 = vpop.xlane.xlu0 %1587
        %v1589 = vmax.f32 %v1418, %v1507
        %1590 = vmax.xlane.f32.xlu0 %v1589
        %v1591 = vpop.xlane.xlu0 %1590
        %v1592 = vmax.f32 %v1420, %v1509
        %1593 = vmax.xlane.f32.xlu0 %v1592
        %v1594 = vpop.xlane.xlu0 %1593
        %v1595 = vmax.f32 %v1423, %v1512
        %1596 = vmax.xlane.f32.xlu0 %v1595
        %v1597 = vpop.xlane.xlu0 %1596
        %v1598 = vmax.f32 %v1425, %v1514
        %1599 = vmax.xlane.f32.xlu0 %v1598
        %v1600 = vpop.xlane.xlu0 %1599
        %v1601 = vmax.f32 %v1428, %v1517
        %1602 = vmax.xlane.f32.xlu0 %v1601
        %v1603 = vpop.xlane.xlu0 %1602
        %v1604 = vmax.f32 %v1430, %v1519
        %1605 = vmax.xlane.f32.xlu0 %v1604
        %v1606 = vpop.xlane.xlu0 %1605
        %v1607 = vmax.f32 %v1433, %v1522
        %1608 = vmax.xlane.f32.xlu0 %v1607
        %v1609 = vpop.xlane.xlu0 %1608
        %v1610 = vmax.f32 %v1435, %v1524
        %1611 = vmax.xlane.f32.xlu0 %v1610
        %v1612 = vpop.xlane.xlu0 %1611
        %v1613 = vmax.f32 %v1438, %v1527
        %1614 = vmax.xlane.f32.xlu0 %v1613
        %v1615 = vpop.xlane.xlu0 %1614
        %v1616 = vmax.f32 %v1440, %v1529
        %1617 = vmax.xlane.f32.xlu0 %v1616
        %v1618 = vpop.xlane.xlu0 %1617
        %v1619 = vmax.f32 %v1443, %v1532
        %1620 = vmax.xlane.f32.xlu0 %v1619
        %v1621 = vpop.xlane.xlu0 %1620
        %v1622 = vmax.f32 %v1445, %v1534
        %1623 = vmax.xlane.f32.xlu0 %v1622
        %v1624 = vpop.xlane.xlu0 %1623
        %v1625 = vmax.f32 %v1448, %v1537
        %1626 = vmax.xlane.f32.xlu0 %v1625
        %v1627 = vpop.xlane.xlu0 %1626
        %v1628 = vmax.f32 %v1450, %v1539
        %1629 = vmax.xlane.f32.xlu0 %v1628
        %v1630 = vpop.xlane.xlu0 %1629
        %v1631 = vmax.f32 %v1453, %v1542
        %1632 = vmax.xlane.f32.xlu0 %v1631
        %v1633 = vpop.xlane.xlu0 %1632
        %v1634 = vmax.f32 %v1455, %v1544
        %1635 = vmax.xlane.f32.xlu0 %v1634
        %v1636 = vpop.xlane.xlu0 %1635
        %v1637 = vmax.f32 %v1458, %v1547
        %1638 = vmax.xlane.f32.xlu0 %v1637
        %v1639 = vpop.xlane.xlu0 %1638
        %v1640 = vmax.f32 %v1460, %v1549
        %1641 = vmax.xlane.f32.xlu0 %v1640
        %v1642 = vpop.xlane.xlu0 %1641
        %v1643 = vmax.f32 %v1463, %v1552
        %1644 = vmax.xlane.f32.xlu0 %v1643
        %v1645 = vpop.xlane.xlu0 %1644
        %v1646 = vmax.f32 %v1465, %v1554
        %1647 = vmax.xlane.f32.xlu0 %v1646
        %v1648 = vpop.xlane.xlu0 %1647
        %v1649 = vmax.f32 %v1468, %v1557
        %1650 = vmax.xlane.f32.xlu0 %v1649
        %v1651 = vpop.xlane.xlu0 %1650
        %v1652 = vmax.f32 %v1470, %v1559
        %1653 = vmax.xlane.f32.xlu0 %v1652
        %v1654 = vpop.xlane.xlu0 %1653
        %v1655 = vmax.f32 %v1473, %v1562
        %1656 = vmax.xlane.f32.xlu0 %v1655
        %v1657 = vpop.xlane.xlu0 %1656
        %v1658 = vmax.f32 %v1475, %v1564
        %1659 = vmax.xlane.f32.xlu0 %v1658
        %v1660 = vpop.xlane.xlu0 %1659
        %v1661 = vmax.f32 %v1478, %v1567
        %1662 = vmax.xlane.f32.xlu0 %v1661
        %v1663 = vpop.xlane.xlu0 %1662
        %v1664 = vmax.f32 %v1480, %v1569
        %1665 = vmax.xlane.f32.xlu0 %v1664
        %v1666 = vpop.xlane.xlu0 %1665
        %v1667 = vsub.f32 %v1403, %v1573
        %v1668 = vsub.f32 %v1492, %v1573
        %v1669 = vsub.f32 %v1405, %v1576
        %v1670 = vsub.f32 %v1494, %v1576
        %v1671 = vsub.f32 %v1408, %v1579
        %v1672 = vsub.f32 %v1497, %v1579
        %v1673 = vsub.f32 %v1410, %v1582
        %v1674 = vsub.f32 %v1499, %v1582
        %v1675 = vsub.f32 %v1413, %v1585
        %v1676 = vsub.f32 %v1502, %v1585
        %v1677 = vsub.f32 %v1415, %v1588
        %v1678 = vsub.f32 %v1504, %v1588
        %v1679 = vsub.f32 %v1418, %v1591
        %v1680 = vsub.f32 %v1507, %v1591
        %v1681 = vsub.f32 %v1420, %v1594
        %v1682 = vsub.f32 %v1509, %v1594
        %v1683 = vsub.f32 %v1423, %v1597
        %v1684 = vsub.f32 %v1512, %v1597
        %v1685 = vsub.f32 %v1425, %v1600
        %v1686 = vsub.f32 %v1514, %v1600
        %v1687 = vsub.f32 %v1428, %v1603
        %v1688 = vsub.f32 %v1517, %v1603
        %v1689 = vsub.f32 %v1430, %v1606
        %v1690 = vsub.f32 %v1519, %v1606
        %v1691 = vsub.f32 %v1433, %v1609
        %v1692 = vsub.f32 %v1522, %v1609
        %v1693 = vsub.f32 %v1435, %v1612
        %v1694 = vsub.f32 %v1524, %v1612
        %v1695 = vsub.f32 %v1438, %v1615
        %v1696 = vsub.f32 %v1527, %v1615
        %v1697 = vsub.f32 %v1440, %v1618
        %v1698 = vsub.f32 %v1529, %v1618
        %v1699 = vsub.f32 %v1443, %v1621
        %v1700 = vsub.f32 %v1532, %v1621
        %v1701 = vsub.f32 %v1445, %v1624
        %v1702 = vsub.f32 %v1534, %v1624
        %v1703 = vsub.f32 %v1448, %v1627
        %v1704 = vsub.f32 %v1537, %v1627
        %v1705 = vsub.f32 %v1450, %v1630
        %v1706 = vsub.f32 %v1539, %v1630
        %v1707 = vsub.f32 %v1453, %v1633
        %v1708 = vsub.f32 %v1542, %v1633
        %v1709 = vsub.f32 %v1455, %v1636
        %v1710 = vsub.f32 %v1544, %v1636
        %v1711 = vsub.f32 %v1458, %v1639
        %v1712 = vsub.f32 %v1547, %v1639
        %v1713 = vsub.f32 %v1460, %v1642
        %v1714 = vsub.f32 %v1549, %v1642
        %v1715 = vsub.f32 %v1463, %v1645
        %v1716 = vsub.f32 %v1552, %v1645
        %v1717 = vsub.f32 %v1465, %v1648
        %v1718 = vsub.f32 %v1554, %v1648
        %v1719 = vsub.f32 %v1468, %v1651
        %v1720 = vsub.f32 %v1557, %v1651
        %v1721 = vsub.f32 %v1470, %v1654
        %v1722 = vsub.f32 %v1559, %v1654
        %v1723 = vsub.f32 %v1473, %v1657
        %v1724 = vsub.f32 %v1562, %v1657
        %v1725 = vsub.f32 %v1475, %v1660
        %v1726 = vsub.f32 %v1564, %v1660
        %v1727 = vsub.f32 %v1478, %v1663
        %v1728 = vsub.f32 %v1567, %v1663
        %v1729 = vsub.f32 %v1480, %v1666
        %v1730 = vsub.f32 %v1569, %v1666
        %v1731 = vmul.f32 %v1667, 1.442695
        %v1732 = vpow.pop %v1731
        %v1733 = vmul.f32 %v1668, 1.442695
        %v1734 = vpow.pop %v1733
        %v1735 = vmul.f32 %v1669, 1.442695
        %v1736 = vpow.pop %v1735
        %v1737 = vmul.f32 %v1670, 1.442695
        %v1738 = vpow.pop %v1737
        %v1739 = vmul.f32 %v1671, 1.442695
        %v1740 = vpow.pop %v1739
        %v1741 = vmul.f32 %v1672, 1.442695
        %v1742 = vpow.pop %v1741
        %v1743 = vmul.f32 %v1673, 1.442695
        %v1744 = vpow.pop %v1743
        %v1745 = vmul.f32 %v1674, 1.442695
        %v1746 = vpow.pop %v1745
        %v1747 = vmul.f32 %v1675, 1.442695
        %v1748 = vpow.pop %v1747
        %v1749 = vmul.f32 %v1676, 1.442695
        %v1750 = vpow.pop %v1749
        %v1751 = vmul.f32 %v1677, 1.442695
        %v1752 = vpow.pop %v1751
        %v1753 = vmul.f32 %v1678, 1.442695
        %v1754 = vpow.pop %v1753
        %v1755 = vmul.f32 %v1679, 1.442695
        %v1756 = vpow.pop %v1755
        %v1757 = vmul.f32 %v1680, 1.442695
        %v1758 = vpow.pop %v1757
        %v1759 = vmul.f32 %v1681, 1.442695
        %v1760 = vpow.pop %v1759
        %v1761 = vmul.f32 %v1682, 1.442695
        %v1762 = vpow.pop %v1761
        %v1763 = vmul.f32 %v1683, 1.442695
        %v1764 = vpow.pop %v1763
        %v1765 = vmul.f32 %v1684, 1.442695
        %v1766 = vpow.pop %v1765
        %v1767 = vmul.f32 %v1685, 1.442695
        %v1768 = vpow.pop %v1767
        %v1769 = vmul.f32 %v1686, 1.442695
        %v1770 = vpow.pop %v1769
        %v1771 = vmul.f32 %v1687, 1.442695
        %v1772 = vpow.pop %v1771
        %v1773 = vmul.f32 %v1688, 1.442695
        %v1774 = vpow.pop %v1773
        %v1775 = vmul.f32 %v1689, 1.442695
        %v1776 = vpow.pop %v1775
        %v1777 = vmul.f32 %v1690, 1.442695
        %v1778 = vpow.pop %v1777
        %v1779 = vmul.f32 %v1691, 1.442695
        %v1780 = vpow.pop %v1779
        %v1781 = vmul.f32 %v1692, 1.442695
        %v1782 = vpow.pop %v1781
        %v1783 = vmul.f32 %v1693, 1.442695
        %v1784 = vpow.pop %v1783
        %v1785 = vmul.f32 %v1694, 1.442695
        %v1786 = vpow.pop %v1785
        %v1787 = vmul.f32 %v1695, 1.442695
        %v1788 = vpow.pop %v1787
        %v1789 = vmul.f32 %v1696, 1.442695
        %v1790 = vpow.pop %v1789
        %v1791 = vmul.f32 %v1697, 1.442695
        %v1792 = vpow.pop %v1791
        %v1793 = vmul.f32 %v1698, 1.442695
        %v1794 = vpow.pop %v1793
        %v1795 = vmul.f32 %v1699, 1.442695
        %v1796 = vpow.pop %v1795
        %v1797 = vmul.f32 %v1700, 1.442695
        %v1798 = vpow.pop %v1797
        %v1799 = vmul.f32 %v1701, 1.442695
        %v1800 = vpow.pop %v1799
        %v1801 = vmul.f32 %v1702, 1.442695
        %v1802 = vpow.pop %v1801
        %v1803 = vmul.f32 %v1703, 1.442695
        %v1804 = vpow.pop %v1803
        %v1805 = vmul.f32 %v1704, 1.442695
        %v1806 = vpow.pop %v1805
        %v1807 = vmul.f32 %v1705, 1.442695
        %v1808 = vpow.pop %v1807
        %v1809 = vmul.f32 %v1706, 1.442695
        %v1810 = vpow.pop %v1809
        %v1811 = vmul.f32 %v1707, 1.442695
        %v1812 = vpow.pop %v1811
        %v1813 = vmul.f32 %v1708, 1.442695
        %v1814 = vpow.pop %v1813
        %v1815 = vmul.f32 %v1709, 1.442695
        %v1816 = vpow.pop %v1815
        %v1817 = vmul.f32 %v1710, 1.442695
        %v1818 = vpow.pop %v1817
        %v1819 = vmul.f32 %v1711, 1.442695
        %v1820 = vpow.pop %v1819
        %v1821 = vmul.f32 %v1712, 1.442695
        %v1822 = vpow.pop %v1821
        %v1823 = vmul.f32 %v1713, 1.442695
        %v1824 = vpow.pop %v1823
        %v1825 = vmul.f32 %v1714, 1.442695
        %v1826 = vpow.pop %v1825
        %v1827 = vmul.f32 %v1715, 1.442695
        %v1828 = vpow.pop %v1827
        %v1829 = vmul.f32 %v1716, 1.442695
        %v1830 = vpow.pop %v1829
        %v1831 = vmul.f32 %v1717, 1.442695
        %v1832 = vpow.pop %v1831
        %v1833 = vmul.f32 %v1718, 1.442695
        %v1834 = vpow.pop %v1833
        %v1835 = vmul.f32 %v1719, 1.442695
        %v1836 = vpow.pop %v1835
        %v1837 = vmul.f32 %v1720, 1.442695
        %v1838 = vpow.pop %v1837
        %v1839 = vmul.f32 %v1721, 1.442695
        %v1840 = vpow.pop %v1839
        %v1841 = vmul.f32 %v1722, 1.442695
        %v1842 = vpow.pop %v1841
        %v1843 = vmul.f32 %v1723, 1.442695
        %v1844 = vpow.pop %v1843
        %v1845 = vmul.f32 %v1724, 1.442695
        %v1846 = vpow.pop %v1845
        %v1847 = vmul.f32 %v1725, 1.442695
        %v1848 = vpow.pop %v1847
        %v1849 = vmul.f32 %v1726, 1.442695
        %v1850 = vpow.pop %v1849
        %v1851 = vmul.f32 %v1727, 1.442695
        %v1852 = vpow.pop %v1851
        %v1853 = vmul.f32 %v1728, 1.442695
        %v1854 = vpow.pop %v1853
        %v1855 = vmul.f32 %v1729, 1.442695
        %v1856 = vpow.pop %v1855
        %v1857 = vmul.f32 %v1730, 1.442695
        %v1858 = vpow.pop %v1857
        %v1859 = vadd.f32 %v1732, %v1734
        %1860 = vadd.xlane.f32.xlu0 %v1859
        %v1861 = vpop.xlane.xlu0 %1860
        %v1862 = vadd.f32 %v1736, %v1738
        %1863 = vadd.xlane.f32.xlu0 %v1862
        %v1864 = vpop.xlane.xlu0 %1863
        %v1865 = vadd.f32 %v1740, %v1742
        %1866 = vadd.xlane.f32.xlu0 %v1865
        %v1867 = vpop.xlane.xlu0 %1866
        %v1868 = vadd.f32 %v1744, %v1746
        %1869 = vadd.xlane.f32.xlu0 %v1868
        %v1870 = vpop.xlane.xlu0 %1869
        %v1871 = vadd.f32 %v1748, %v1750
        %1872 = vadd.xlane.f32.xlu0 %v1871
        %v1873 = vpop.xlane.xlu0 %1872
        %v1874 = vadd.f32 %v1752, %v1754
        %1875 = vadd.xlane.f32.xlu0 %v1874
        %v1876 = vpop.xlane.xlu0 %1875
        %v1877 = vadd.f32 %v1756, %v1758
        %1878 = vadd.xlane.f32.xlu0 %v1877
        %v1879 = vpop.xlane.xlu0 %1878
        %v1880 = vadd.f32 %v1760, %v1762
        %1881 = vadd.xlane.f32.xlu0 %v1880
        %v1882 = vpop.xlane.xlu0 %1881
        %v1883 = vadd.f32 %v1764, %v1766
        %1884 = vadd.xlane.f32.xlu0 %v1883
        %v1885 = vpop.xlane.xlu0 %1884
        %v1886 = vadd.f32 %v1768, %v1770
        %1887 = vadd.xlane.f32.xlu0 %v1886
        %v1888 = vpop.xlane.xlu0 %1887
        %v1889 = vadd.f32 %v1772, %v1774
        %1890 = vadd.xlane.f32.xlu0 %v1889
        %v1891 = vpop.xlane.xlu0 %1890
        %v1892 = vadd.f32 %v1776, %v1778
        %1893 = vadd.xlane.f32.xlu0 %v1892
        %v1894 = vpop.xlane.xlu0 %1893
        %v1895 = vadd.f32 %v1780, %v1782
        %1896 = vadd.xlane.f32.xlu0 %v1895
        %v1897 = vpop.xlane.xlu0 %1896
        %v1898 = vadd.f32 %v1784, %v1786
        %1899 = vadd.xlane.f32.xlu0 %v1898
        %v1900 = vpop.xlane.xlu0 %1899
        %v1901 = vadd.f32 %v1788, %v1790
        %1902 = vadd.xlane.f32.xlu0 %v1901
        %v1903 = vpop.xlane.xlu0 %1902
        %v1904 = vadd.f32 %v1792, %v1794
        %1905 = vadd.xlane.f32.xlu0 %v1904
        %v1906 = vpop.xlane.xlu0 %1905
        %v1907 = vadd.f32 %v1796, %v1798
        %1908 = vadd.xlane.f32.xlu0 %v1907
        %v1909 = vpop.xlane.xlu0 %1908
        %v1910 = vadd.f32 %v1800, %v1802
        %1911 = vadd.xlane.f32.xlu0 %v1910
        %v1912 = vpop.xlane.xlu0 %1911
        %v1913 = vadd.f32 %v1804, %v1806
        %1914 = vadd.xlane.f32.xlu0 %v1913
        %v1915 = vpop.xlane.xlu0 %1914
        %v1916 = vadd.f32 %v1808, %v1810
        %1917 = vadd.xlane.f32.xlu0 %v1916
        %v1918 = vpop.xlane.xlu0 %1917
        %v1919 = vadd.f32 %v1812, %v1814
        %1920 = vadd.xlane.f32.xlu0 %v1919
        %v1921 = vpop.xlane.xlu0 %1920
        %v1922 = vadd.f32 %v1816, %v1818
        %1923 = vadd.xlane.f32.xlu0 %v1922
        %v1924 = vpop.xlane.xlu0 %1923
        %v1925 = vadd.f32 %v1820, %v1822
        %1926 = vadd.xlane.f32.xlu0 %v1925
        %v1927 = vpop.xlane.xlu0 %1926
        %v1928 = vadd.f32 %v1824, %v1826
        %1929 = vadd.xlane.f32.xlu0 %v1928
        %v1930 = vpop.xlane.xlu0 %1929
        %v1931 = vadd.f32 %v1828, %v1830
        %1932 = vadd.xlane.f32.xlu0 %v1931
        %v1933 = vpop.xlane.xlu0 %1932
        %v1934 = vadd.f32 %v1832, %v1834
        %1935 = vadd.xlane.f32.xlu0 %v1934
        %v1936 = vpop.xlane.xlu0 %1935
        %v1937 = vadd.f32 %v1836, %v1838
        %1938 = vadd.xlane.f32.xlu0 %v1937
        %v1939 = vpop.xlane.xlu0 %1938
        %v1940 = vadd.f32 %v1840, %v1842
        %1941 = vadd.xlane.f32.xlu0 %v1940
        %v1942 = vpop.xlane.xlu0 %1941
        %v1943 = vadd.f32 %v1844, %v1846
        %1944 = vadd.xlane.f32.xlu0 %v1943
        %v1945 = vpop.xlane.xlu0 %1944
        %v1946 = vadd.f32 %v1848, %v1850
        %1947 = vadd.xlane.f32.xlu0 %v1946
        %v1948 = vpop.xlane.xlu0 %1947
        %v1949 = vadd.f32 %v1852, %v1854
        %1950 = vadd.xlane.f32.xlu0 %v1949
        %v1951 = vpop.xlane.xlu0 %1950
        %v1952 = vadd.f32 %v1856, %v1858
        %1953 = vadd.xlane.f32.xlu0 %v1952
        %v1954 = vpop.xlane.xlu0 %1953
        %v1955 = vrcp.pop %v1861
        %v1956 = vrcp.pop %v1864
        %v1957 = vrcp.pop %v1867
        %v1958 = vrcp.pop %v1870
        %v1959 = vrcp.pop %v1873
        %v1960 = vrcp.pop %v1876
        %v1961 = vrcp.pop %v1879
        %v1962 = vrcp.pop %v1882
        %v1963 = vrcp.pop %v1885
        %v1964 = vrcp.pop %v1888
        %v1965 = vrcp.pop %v1891
        %v1966 = vrcp.pop %v1894
        %v1967 = vrcp.pop %v1897
        %v1968 = vrcp.pop %v1900
        %v1969 = vrcp.pop %v1903
        %v1970 = vrcp.pop %v1906
        %v1971 = vrcp.pop %v1909
        %v1972 = vrcp.pop %v1912
        %v1973 = vrcp.pop %v1915
        %v1974 = vrcp.pop %v1918
        %v1975 = vrcp.pop %v1921
        %v1976 = vrcp.pop %v1924
        %v1977 = vrcp.pop %v1927
        %v1978 = vrcp.pop %v1930
        %v1979 = vrcp.pop %v1933
        %v1980 = vrcp.pop %v1936
        %v1981 = vrcp.pop %v1939
        %v1982 = vrcp.pop %v1942
        %v1983 = vrcp.pop %v1945
        %v1984 = vrcp.pop %v1948
        %v1985 = vrcp.pop %v1951
        %v1986 = vrcp.pop %v1954
        %v1987 = vmul.f32 %v1732, %v1955
        %v1988 = vmul.f32 %v1734, %v1955
        %v1989 = vmul.f32 %v1736, %v1956
        %v1990 = vmul.f32 %v1738, %v1956
        %v1991 = vmul.f32 %v1740, %v1957
        %v1992 = vmul.f32 %v1742, %v1957
        %v1993 = vmul.f32 %v1744, %v1958
        %v1994 = vmul.f32 %v1746, %v1958
        %v1995 = vmul.f32 %v1748, %v1959
        %v1996 = vmul.f32 %v1750, %v1959
        %v1997 = vmul.f32 %v1752, %v1960
        %v1998 = vmul.f32 %v1754, %v1960
        %v1999 = vmul.f32 %v1756, %v1961
        %v2000 = vmul.f32 %v1758, %v1961
        %v2001 = vmul.f32 %v1760, %v1962
        %v2002 = vmul.f32 %v1762, %v1962
        %v2003 = vmul.f32 %v1764, %v1963
        %v2004 = vmul.f32 %v1766, %v1963
        %v2005 = vmul.f32 %v1768, %v1964
        %v2006 = vmul.f32 %v1770, %v1964
        %v2007 = vmul.f32 %v1772, %v1965
        %v2008 = vmul.f32 %v1774, %v1965
        %v2009 = vmul.f32 %v1776, %v1966
        %v2010 = vmul.f32 %v1778, %v1966
        %v2011 = vmul.f32 %v1780, %v1967
        %v2012 = vmul.f32 %v1782, %v1967
        %v2013 = vmul.f32 %v1784, %v1968
        %v2014 = vmul.f32 %v1786, %v1968
        %v2015 = vmul.f32 %v1788, %v1969
        %v2016 = vmul.f32 %v1790, %v1969
        %v2017 = vmul.f32 %v1792, %v1970
        %v2018 = vmul.f32 %v1794, %v1970
        %v2019 = vmul.f32 %v1796, %v1971
        %v2020 = vmul.f32 %v1798, %v1971
        %v2021 = vmul.f32 %v1800, %v1972
        %v2022 = vmul.f32 %v1802, %v1972
        %v2023 = vmul.f32 %v1804, %v1973
        %v2024 = vmul.f32 %v1806, %v1973
        %v2025 = vmul.f32 %v1808, %v1974
        %v2026 = vmul.f32 %v1810, %v1974
        %v2027 = vmul.f32 %v1812, %v1975
        %v2028 = vmul.f32 %v1814, %v1975
        %v2029 = vmul.f32 %v1816, %v1976
        %v2030 = vmul.f32 %v1818, %v1976
        %v2031 = vmul.f32 %v1820, %v1977
        %v2032 = vmul.f32 %v1822, %v1977
        %v2033 = vmul.f32 %v1824, %v1978
        %v2034 = vmul.f32 %v1826, %v1978
        %v2035 = vmul.f32 %v1828, %v1979
        %v2036 = vmul.f32 %v1830, %v1979
        %v2037 = vmul.f32 %v1832, %v1980
        %v2038 = vmul.f32 %v1834, %v1980
        %v2039 = vmul.f32 %v1836, %v1981
        %v2040 = vmul.f32 %v1838, %v1981
        %v2041 = vmul.f32 %v1840, %v1982
        %v2042 = vmul.f32 %v1842, %v1982
        %v2043 = vmul.f32 %v1844, %v1983
        %v2044 = vmul.f32 %v1846, %v1983
        %v2045 = vmul.f32 %v1848, %v1984
        %v2046 = vmul.f32 %v1850, %v1984
        %v2047 = vmul.f32 %v1852, %v1985
        %v2048 = vmul.f32 %v1854, %v1985
        %v2049 = vmul.f32 %v1856, %v1986
        %v2050 = vmul.f32 %v1858, %v1986
        %v2051 = vpack.c.bf16 %v1989, %v1987
        %v2052 = vpack.c.bf16 %v1990, %v1988
        %v2053 = vpack.c.bf16 %v1993, %v1991
        %v2054 = vpack.c.bf16 %v1994, %v1992
        %v2055 = vpack.c.bf16 %v1997, %v1995
        %v2056 = vpack.c.bf16 %v1998, %v1996
        %v2057 = vpack.c.bf16 %v2001, %v1999
        %v2058 = vpack.c.bf16 %v2002, %v2000
        %v2059 = vpack.c.bf16 %v2005, %v2003
        %v2060 = vpack.c.bf16 %v2006, %v2004
        %v2061 = vpack.c.bf16 %v2009, %v2007
        %v2062 = vpack.c.bf16 %v2010, %v2008
        %v2063 = vpack.c.bf16 %v2013, %v2011
        %v2064 = vpack.c.bf16 %v2014, %v2012
        %v2065 = vpack.c.bf16 %v2017, %v2015
        %v2066 = vpack.c.bf16 %v2018, %v2016
        %v2067 = vpack.c.bf16 %v2021, %v2019
        %v2068 = vpack.c.bf16 %v2022, %v2020
        %v2069 = vpack.c.bf16 %v2025, %v2023
        %v2070 = vpack.c.bf16 %v2026, %v2024
        %v2071 = vpack.c.bf16 %v2029, %v2027
        %v2072 = vpack.c.bf16 %v2030, %v2028
        %v2073 = vpack.c.bf16 %v2033, %v2031
        %v2074 = vpack.c.bf16 %v2034, %v2032
        %v2075 = vpack.c.bf16 %v2037, %v2035
        %v2076 = vpack.c.bf16 %v2038, %v2036
        %v2077 = vpack.c.bf16 %v2041, %v2039
        %v2078 = vpack.c.bf16 %v2042, %v2040
        %v2079 = vpack.c.bf16 %v2045, %v2043
        %v2080 = vpack.c.bf16 %v2046, %v2044
        %v2081 = vpack.c.bf16 %v2049, %v2047
        %v2082 = vpack.c.bf16 %v2050, %v2048
        %2083 = vmatpush.bf16.msra.mxu0 %v1384
        %2084 = vmatpush.bf16.msra.mxu0 %v1383
        %2085 = vmatpush.bf16.msra.mxu0 %v1382
        %2086 = vmatpush.bf16.msra.mxu0 %v1381
        %2087 = vmatpush.bf16.msra.mxu0 %v1380
        %2088 = vmatpush.bf16.msra.mxu0 %v1379
        %2089 = vmatpush.bf16.msra.mxu0 %v1378
        %2090 = vmatpush.bf16.msra.mxu0 %v1377
        %2091 = vmatmul.bf16.gmra.mxu0 %v2051
        %v2092 = vpop.f32.mrf.mxu0
        %v2093 = vadd.f32 0.0, %v2092
        %v2094 = vpop.f32.mrf.mxu0
        %v2095 = vadd.f32 0.0, %v2094
        %2096 = vmatmul.bf16.gmra.mxu0 %v2053
        %v2097 = vpop.f32.mrf.mxu0
        %v2098 = vadd.f32 0.0, %v2097
        %v2099 = vpop.f32.mrf.mxu0
        %v2100 = vadd.f32 0.0, %v2099
        %2101 = vmatmul.bf16.gmra.mxu0 %v2055
        %v2102 = vpop.f32.mrf.mxu0
        %v2103 = vadd.f32 0.0, %v2102
        %v2104 = vpop.f32.mrf.mxu0
        %v2105 = vadd.f32 0.0, %v2104
        %2106 = vmatmul.bf16.gmra.mxu0 %v2057
        %v2107 = vpop.f32.mrf.mxu0
        %v2108 = vadd.f32 0.0, %v2107
        %v2109 = vpop.f32.mrf.mxu0
        %v2110 = vadd.f32 0.0, %v2109
        %2111 = vmatmul.bf16.gmra.mxu0 %v2059
        %v2112 = vpop.f32.mrf.mxu0
        %v2113 = vadd.f32 0.0, %v2112
        %v2114 = vpop.f32.mrf.mxu0
        %v2115 = vadd.f32 0.0, %v2114
        %2116 = vmatmul.bf16.gmra.mxu0 %v2061
        %v2117 = vpop.f32.mrf.mxu0
        %v2118 = vadd.f32 0.0, %v2117
        %v2119 = vpop.f32.mrf.mxu0
        %v2120 = vadd.f32 0.0, %v2119
        %2121 = vmatmul.bf16.gmra.mxu0 %v2063
        %v2122 = vpop.f32.mrf.mxu0
        %v2123 = vadd.f32 0.0, %v2122
        %v2124 = vpop.f32.mrf.mxu0
        %v2125 = vadd.f32 0.0, %v2124
        %2126 = vmatmul.bf16.gmra.mxu0 %v2065
        %v2127 = vpop.f32.mrf.mxu0
        %v2128 = vadd.f32 0.0, %v2127
        %v2129 = vpop.f32.mrf.mxu0
        %v2130 = vadd.f32 0.0, %v2129
        %2131 = vmatmul.bf16.gmra.mxu0 %v2067
        %v2132 = vpop.f32.mrf.mxu0
        %v2133 = vadd.f32 0.0, %v2132
        %v2134 = vpop.f32.mrf.mxu0
        %v2135 = vadd.f32 0.0, %v2134
        %2136 = vmatmul.bf16.gmra.mxu0 %v2069
        %v2137 = vpop.f32.mrf.mxu0
        %v2138 = vadd.f32 0.0, %v2137
        %v2139 = vpop.f32.mrf.mxu0
        %v2140 = vadd.f32 0.0, %v2139
        %2141 = vmatmul.bf16.gmra.mxu0 %v2071
        %v2142 = vpop.f32.mrf.mxu0
        %v2143 = vadd.f32 0.0, %v2142
        %v2144 = vpop.f32.mrf.mxu0
        %v2145 = vadd.f32 0.0, %v2144
        %2146 = vmatmul.bf16.gmra.mxu0 %v2073
        %v2147 = vpop.f32.mrf.mxu0
        %v2148 = vadd.f32 0.0, %v2147
        %v2149 = vpop.f32.mrf.mxu0
        %v2150 = vadd.f32 0.0, %v2149
        %2151 = vmatmul.bf16.gmra.mxu0 %v2075
        %v2152 = vpop.f32.mrf.mxu0
        %v2153 = vadd.f32 0.0, %v2152
        %v2154 = vpop.f32.mrf.mxu0
        %v2155 = vadd.f32 0.0, %v2154
        %2156 = vmatmul.bf16.gmra.mxu0 %v2077
        %v2157 = vpop.f32.mrf.mxu0
        %v2158 = vadd.f32 0.0, %v2157
        %v2159 = vpop.f32.mrf.mxu0
        %v2160 = vadd.f32 0.0, %v2159
        %2161 = vmatmul.bf16.gmra.mxu0 %v2079
        %v2162 = vpop.f32.mrf.mxu0
        %v2163 = vadd.f32 0.0, %v2162
        %v2164 = vpop.f32.mrf.mxu0
        %v2165 = vadd.f32 0.0, %v2164
        %2166 = vmatmul.bf16.gmra.mxu0 %v2081
        %v2167 = vpop.f32.mrf.mxu0
        %v2168 = vadd.f32 0.0, %v2167
        %v2169 = vpop.f32.mrf.mxu0
        %v2170 = vadd.f32 0.0, %v2169
        %2171 = vdwg.mxu0
        %2172 = vmatpush.bf16.msra.mxu0 %v1392
        %2173 = vmatpush.bf16.msra.mxu0 %v1391
        %2174 = vmatpush.bf16.msra.mxu0 %v1390
        %2175 = vmatpush.bf16.msra.mxu0 %v1389
        %2176 = vmatpush.bf16.msra.mxu0 %v1388
        %2177 = vmatpush.bf16.msra.mxu0 %v1387
        %2178 = vmatpush.bf16.msra.mxu0 %v1386
        %2179 = vmatpush.bf16.msra.mxu0 %v1385
        %2180 = vmatmul.bf16.gmra.mxu0 %v2052
        %v2181 = vpop.f32.mrf.mxu0
        %v2182 = vadd.f32 %v2093, %v2181
        %v2183 = vpop.f32.mrf.mxu0
        %v2184 = vadd.f32 %v2095, %v2183
        %2185 = vmatmul.bf16.gmra.mxu0 %v2054
        %v2186 = vpop.f32.mrf.mxu0
        %v2187 = vadd.f32 %v2098, %v2186
        %v2188 = vpop.f32.mrf.mxu0
        %v2189 = vadd.f32 %v2100, %v2188
        %2190 = vmatmul.bf16.gmra.mxu0 %v2056
        %v2191 = vpop.f32.mrf.mxu0
        %v2192 = vadd.f32 %v2103, %v2191
        %v2193 = vpop.f32.mrf.mxu0
        %v2194 = vadd.f32 %v2105, %v2193
        %2195 = vmatmul.bf16.gmra.mxu0 %v2058
        %v2196 = vpop.f32.mrf.mxu0
        %v2197 = vadd.f32 %v2108, %v2196
        %v2198 = vpop.f32.mrf.mxu0
        %v2199 = vadd.f32 %v2110, %v2198
        %2200 = vmatmul.bf16.gmra.mxu0 %v2060
        %v2201 = vpop.f32.mrf.mxu0
        %v2202 = vadd.f32 %v2113, %v2201
        %v2203 = vpop.f32.mrf.mxu0
        %v2204 = vadd.f32 %v2115, %v2203
        %2205 = vmatmul.bf16.gmra.mxu0 %v2062
        %v2206 = vpop.f32.mrf.mxu0
        %v2207 = vadd.f32 %v2118, %v2206
        %v2208 = vpop.f32.mrf.mxu0
        %v2209 = vadd.f32 %v2120, %v2208
        %2210 = vmatmul.bf16.gmra.mxu0 %v2064
        %v2211 = vpop.f32.mrf.mxu0
        %v2212 = vadd.f32 %v2123, %v2211
        %v2213 = vpop.f32.mrf.mxu0
        %v2214 = vadd.f32 %v2125, %v2213
        %2215 = vmatmul.bf16.gmra.mxu0 %v2066
        %v2216 = vpop.f32.mrf.mxu0
        %v2217 = vadd.f32 %v2128, %v2216
        %v2218 = vpop.f32.mrf.mxu0
        %v2219 = vadd.f32 %v2130, %v2218
        %2220 = vmatmul.bf16.gmra.mxu0 %v2068
        %v2221 = vpop.f32.mrf.mxu0
        %v2222 = vadd.f32 %v2133, %v2221
        %v2223 = vpop.f32.mrf.mxu0
        %v2224 = vadd.f32 %v2135, %v2223
        %2225 = vmatmul.bf16.gmra.mxu0 %v2070
        %v2226 = vpop.f32.mrf.mxu0
        %v2227 = vadd.f32 %v2138, %v2226
        %v2228 = vpop.f32.mrf.mxu0
        %v2229 = vadd.f32 %v2140, %v2228
        %2230 = vmatmul.bf16.gmra.mxu0 %v2072
        %v2231 = vpop.f32.mrf.mxu0
        %v2232 = vadd.f32 %v2143, %v2231
        %v2233 = vpop.f32.mrf.mxu0
        %v2234 = vadd.f32 %v2145, %v2233
        %2235 = vmatmul.bf16.gmra.mxu0 %v2074
        %v2236 = vpop.f32.mrf.mxu0
        %v2237 = vadd.f32 %v2148, %v2236
        %v2238 = vpop.f32.mrf.mxu0
        %v2239 = vadd.f32 %v2150, %v2238
        %2240 = vmatmul.bf16.gmra.mxu0 %v2076
        %v2241 = vpop.f32.mrf.mxu0
        %v2242 = vadd.f32 %v2153, %v2241
        %v2243 = vpop.f32.mrf.mxu0
        %v2244 = vadd.f32 %v2155, %v2243
        %2245 = vmatmul.bf16.gmra.mxu0 %v2078
        %v2246 = vpop.f32.mrf.mxu0
        %v2247 = vadd.f32 %v2158, %v2246
        %v2248 = vpop.f32.mrf.mxu0
        %v2249 = vadd.f32 %v2160, %v2248
        %2250 = vmatmul.bf16.gmra.mxu0 %v2080
        %v2251 = vpop.f32.mrf.mxu0
        %v2252 = vadd.f32 %v2163, %v2251
        %v2253 = vpop.f32.mrf.mxu0
        %v2254 = vadd.f32 %v2165, %v2253
        %2255 = vmatmul.bf16.gmra.mxu0 %v2082
        %v2256 = vpop.f32.mrf.mxu0
        %v2257 = vadd.f32 %v2168, %v2256
        %v2258 = vpop.f32.mrf.mxu0
        %v2259 = vadd.f32 %v2170, %v2258
        %2260 = vdwg.mxu0
        %s2261 = sld [smem:[#allocation3]]
        %v2262 = vstv %s2261
        %v2263 = vmul.f32 %v2262, %v2182
        %v2264 = vmul.f32 %v2262, %v2184
        %v2265 = vmul.f32 %v2262, %v2187
        %v2266 = vmul.f32 %v2262, %v2189
        %v2267 = vmul.f32 %v2262, %v2192
        %v2268 = vmul.f32 %v2262, %v2194
        %v2269 = vmul.f32 %v2262, %v2197
        %v2270 = vmul.f32 %v2262, %v2199
        %v2271 = vmul.f32 %v2262, %v2202
        %v2272 = vmul.f32 %v2262, %v2204
        %v2273 = vmul.f32 %v2262, %v2207
        %v2274 = vmul.f32 %v2262, %v2209
        %v2275 = vmul.f32 %v2262, %v2212
        %v2276 = vmul.f32 %v2262, %v2214
        %v2277 = vmul.f32 %v2262, %v2217
        %v2278 = vmul.f32 %v2262, %v2219
        %v2279 = vmul.f32 %v2262, %v2222
        %v2280 = vmul.f32 %v2262, %v2224
        %v2281 = vmul.f32 %v2262, %v2227
        %v2282 = vmul.f32 %v2262, %v2229
        %v2283 = vmul.f32 %v2262, %v2232
        %v2284 = vmul.f32 %v2262, %v2234
        %v2285 = vmul.f32 %v2262, %v2237
        %v2286 = vmul.f32 %v2262, %v2239
        %v2287 = vmul.f32 %v2262, %v2242
        %v2288 = vmul.f32 %v2262, %v2244
        %v2289 = vmul.f32 %v2262, %v2247
        %v2290 = vmul.f32 %v2262, %v2249
        %v2291 = vmul.f32 %v2262, %v2252
        %v2292 = vmul.f32 %v2262, %v2254
        %v2293 = vmul.f32 %v2262, %v2257
        %v2294 = vmul.f32 %v2262, %v2259
        %v2295 = vadd.f32 %v2263, %v874
        %v2296 = vadd.f32 %v2264, %v875
        %v2297 = vadd.f32 %v2265, %v876
        %v2298 = vadd.f32 %v2266, %v877
        %v2299 = vadd.f32 %v2267, %v878
        %v2300 = vadd.f32 %v2268, %v879
        %v2301 = vadd.f32 %v2269, %v880
        %v2302 = vadd.f32 %v2270, %v881
        %v2303 = vadd.f32 %v2271, %v882
        %v2304 = vadd.f32 %v2272, %v883
        %v2305 = vadd.f32 %v2273, %v884
        %v2306 = vadd.f32 %v2274, %v885
        %v2307 = vadd.f32 %v2275, %v886
        %v2308 = vadd.f32 %v2276, %v887
        %v2309 = vadd.f32 %v2277, %v888
        %v2310 = vadd.f32 %v2278, %v889
        %v2311 = vadd.f32 %v2279, %v890
        %v2312 = vadd.f32 %v2280, %v891
        %v2313 = vadd.f32 %v2281, %v892
        %v2314 = vadd.f32 %v2282, %v893
        %v2315 = vadd.f32 %v2283, %v894
        %v2316 = vadd.f32 %v2284, %v895
        %v2317 = vadd.f32 %v2285, %v896
        %v2318 = vadd.f32 %v2286, %v897
        %v2319 = vadd.f32 %v2287, %v898
        %v2320 = vadd.f32 %v2288, %v899
        %v2321 = vadd.f32 %v2289, %v900
        %v2322 = vadd.f32 %v2290, %v901
        %v2323 = vadd.f32 %v2291, %v902
        %v2324 = vadd.f32 %v2292, %v903
        %v2325 = vadd.f32 %v2293, %v904
        %v2326 = vadd.f32 %v2294, %v905
        %2327 = vst.msk [vmem:[%s354] sm:$0xff] %vm494, %v2295
        %2328 = vst.msk [vmem:[%s354 + $0x8] sm:$0xff] %vm494, %v2296
        %2329 = vst.msk [vmem:[%s354 + $0x10] sm:$0xff] %vm494, %v2297
        %2330 = vst.msk [vmem:[%s354 + $0x18] sm:$0xff] %vm494, %v2298
        %2331 = vst.msk [vmem:[%s354 + $0x20] sm:$0xff] %vm494, %v2299
        %2332 = vst.msk [vmem:[%s354 + $0x28] sm:$0xff] %vm494, %v2300
        %2333 = vst.msk [vmem:[%s354 + $0x30] sm:$0xff] %vm494, %v2301
        %2334 = vst.msk [vmem:[%s354 + $0x38] sm:$0xff] %vm494, %v2302
        %2335 = vst.msk [vmem:[%s354 + $0x40] sm:$0xff] %vm494, %v2303
        %2336 = vst.msk [vmem:[%s354 + $0x48] sm:$0xff] %vm494, %v2304
        %2337 = vst.msk [vmem:[%s354 + $0x50] sm:$0xff] %vm494, %v2305
        %2338 = vst.msk [vmem:[%s354 + $0x58] sm:$0xff] %vm494, %v2306
        %2339 = vst.msk [vmem:[%s354 + $0x60] sm:$0xff] %vm494, %v2307
        %2340 = vst.msk [vmem:[%s354 + $0x68] sm:$0xff] %vm494, %v2308
        %2341 = vst.msk [vmem:[%s354 + $0x70] sm:$0xff] %vm494, %v2309
        %2342 = vst.msk [vmem:[%s354 + $0x78] sm:$0xff] %vm494, %v2310
        %2343 = vst.msk [vmem:[%s354 + $0x80] sm:$0xff] %vm494, %v2311
        %2344 = vst.msk [vmem:[%s354 + $0x88] sm:$0xff] %vm494, %v2312
        %2345 = vst.msk [vmem:[%s354 + $0x90] sm:$0xff] %vm494, %v2313
        %2346 = vst.msk [vmem:[%s354 + $0x98] sm:$0xff] %vm494, %v2314
        %2347 = vst.msk [vmem:[%s354 + $0xa0] sm:$0xff] %vm494, %v2315
        %2348 = vst.msk [vmem:[%s354 + $0xa8] sm:$0xff] %vm494, %v2316
        %2349 = vst.msk [vmem:[%s354 + $0xb0] sm:$0xff] %vm494, %v2317
        %2350 = vst.msk [vmem:[%s354 + $0xb8] sm:$0xff] %vm494, %v2318
        %2351 = vst.msk [vmem:[%s354 + $0xc0] sm:$0xff] %vm494, %v2319
        %2352 = vst.msk [vmem:[%s354 + $0xc8] sm:$0xff] %vm494, %v2320
        %2353 = vst.msk [vmem:[%s354 + $0xd0] sm:$0xff] %vm494, %v2321
        %2354 = vst.msk [vmem:[%s354 + $0xd8] sm:$0xff] %vm494, %v2322
        %2355 = vst.msk [vmem:[%s354 + $0xe0] sm:$0xff] %vm494, %v2323
        %2356 = vst.msk [vmem:[%s354 + $0xe8] sm:$0xff] %vm494, %v2324
        %2357 = vst.msk [vmem:[%s354 + $0xf0] sm:$0xff] %vm494, %v2325
        %2358 = vst.msk [vmem:[%s354 + $0xf8] sm:$0xff] %vm494, %v2326
        %s2359 = sand.u32 %s230, 1
        %s2360 = scalar_lea.sflag [#allocation6], %s2359
        %s2361 = sand.u32 %s230, 1
        %s2362 = smul.addr %s2361, 256
        %s2363 = scalar_lea.vmem [#allocation7], %s2362
        // Predicated region
        $region61: #{positioning_forward.1} parent=55 // pred_check
          %p2364 = pneg %p240
        $region62: #{positioning_forward.1} parent=55 // pred_check_branch
          %2366 = sbr.rel (%p2364) target = $region64
        $region63: #{positioning_forward.1} parent=55 // pred_region
          %2368 = vsyncadd %s2360, 0
          %s2369 = smul.addr %s28, 32
          %s2370 = smul.addr %s2369, 8
          %s2371 = scalar_lea.hbm %s9, %s2370
          %s2372 = sshll.u32 %s2363, 4
          %s2373 = int_to_ptr.vmem [resolvable:$true] %s2372
          %s2374 = sshll.u32 %s2371, 4
          %s2375 = int_to_ptr.hbm [resolvable:$true] %s2374
          %2380 = dma.vmem_to_hbm [thread:$0]  %s2373, 4096, %s2375, %s2360, 128, 128, 8
        $region64: #{positioning_forward.1} parent=55 // pred_fallthru
          _
      $region56: #{positioning_forward.1} parent=5 // pred_fallthru
        _
      %p2381 = scmp.le.s32.totalorder 2, %s23
      // Predicated region
      $region65: #{positioning_forward.1} parent=5 // pred_check
        %p2382 = pneg %p2381
      $region66: #{positioning_forward.1} parent=5 // pred_check_branch
        %2384 = sbr.rel (%p2382) target = $region68
      $region67: #{positioning_forward.1} parent=5 // pred_region
        %s2385 = ssub.s32 %s23, 2
        // Predicated region
        $region69: #{positioning_forward.1} parent=67 // pred_check
          %p2386 = pneg %p246
        $region70: #{positioning_forward.1} parent=67 // pred_check_branch
          %2388 = sbr.rel (%p2386) target = $region72
        $region71: #{positioning_forward.1} parent=67 // pred_region
          %s2389 = sand.u32 %s231, 1
          %s2390 = scalar_lea.sflag [#allocation6], %s2389
          %s2391 = sand.u32 %s231, 1
          %s2392 = smul.addr %s2391, 256
          %s2393 = scalar_lea.vmem [#allocation7], %s2392
          %2395 = dma.done %s2390, 4096
        $region72: #{positioning_forward.1} parent=67 // pred_fallthru
          _
      $region68: #{positioning_forward.1} parent=5 // pred_fallthru
        _
    $region6: #{positioning_forward.1} parent=1 // loop_footer
      %s27 = sadd.s32 1, %s23
    $region7: #{positioning_forward.1} parent=1 // loop_footer_branch
      %22 = sbr.rel target = $region3
    $region8: #{positioning_forward.1} parent=1 // loop_exit
      _
    %2396 = vsyncpa [#allocation5], 1
    %s2397 = scalar_lea.sflag [#allocation5], 1
    %2398 = vsyncpa %s2397, 1
    %2399 = vsyncpa [#allocation6], 1
    %s2400 = scalar_lea.sflag [#allocation6], 1
    %2401 = vsyncpa %s2400, 1

</llo_original>
